<compile_context>
chip_gen: v7x
topology: tpu7x:2x2x1
jax: 0.10.0
libtpu: 0.0.40
codegen_flags: <defaults>
</compile_context>

<pallas_src>
import functools

import jax
import jax.numpy as jnp
from jax.experimental import pallas as pl
from jax.experimental.pallas import tpu as pltpu

EPS = 1e-5


def _edge_masks(C, H, W):
    """Boolean masks over the flat (C, H*W) layout marking reflection edges."""
    HW = H * W
    p = jax.lax.broadcasted_iota(jnp.int32, (C, HW), 1)
    m_row0 = p < W                      # h == 0
    m_rowL = p >= HW - W                # h == H-1
    # Column index without integer div/rem (float math is exact at these sizes).
    pf = p.astype(jnp.float32)
    col = pf - jnp.floor(pf / float(W)) * float(W)
    m_col0 = col < 0.5                  # w == 0
    m_colL = col > float(W) - 1.5       # w == W-1
    return m_row0, m_rowL, m_col0, m_colL


def _conv3x3_instance_norm(x, w_ref, acc_ref, masks, H, W):
    """reflect-pad(1) -> 3x3 conv -> InstanceNorm(affine=False), on flat (C, H*W).

    x:       (Cin, H*W)  f32 activation (flattened row-major, p = h*W + w).
    w_ref:   (9, Cout, Cin) weights (compute dtype), tap index k = ky*3 + kx.
    acc_ref: (Cout, H*W) f32 VMEM accumulator scratch.
    Returns (Cout, H*W) f32 normalized conv output.  Conv bias omitted: exact
    no-op under affine-free InstanceNorm (mean subtraction removes it).
    """
    HW = H * W
    m_row0, m_rowL, m_col0, m_colL = masks
    cdt = w_ref.dtype  # MXU operand dtype (f32 or bf16)

    # Row-shifted views (value from row h-1 / h / h+1, with reflection at edges).
    # pltpu.roll follows jnp.roll semantics: out[p] = in[p - shift].
    up = pltpu.roll(x, shift=W, axis=1)        # out[p] = x[p - W]  (row h-1)
    dn = pltpu.roll(x, shift=HW - W, axis=1)   # out[p] = x[p + W]  (row h+1)
    rows = (jnp.where(m_row0, dn, up),         # ky = 0: row -1 -> row 1
            x,                                 # ky = 1
            jnp.where(m_rowL, up, dn))         # ky = 2: row H  -> row H-2

    # 9 accumulated dots on shifted views.  Static 3x3 loop is fine here: each
    # shifted view dies right after its dot and the accumulator lives in VMEM.
    acc_ref[...] = jnp.zeros_like(acc_ref)
    for ky, xr in enumerate(rows):
        lt = pltpu.roll(xr, shift=1, axis=1)       # out[p] = xr[p - 1] (col w-1)
        rt = pltpu.roll(xr, shift=HW - 1, axis=1)  # out[p] = xr[p + 1] (col w+1)
        cols = (jnp.where(m_col0, rt, lt),         # kx = 0: col -1 -> col 1
                xr,                                # kx = 1
                jnp.where(m_colL, lt, rt))         # kx = 2: col W  -> col W-2
        for kx, xs in enumerate(cols):
            k = ky * 3 + kx
            acc_ref[...] += jnp.dot(w_ref[k], xs.astype(cdt),
                                    preferred_element_type=jnp.float32)

    # InstanceNorm2d (affine=False, biased variance); statistics in f32 from a
    # single read of the accumulator (sum and sum-of-squares in one traversal).
    acc = acc_ref[...]
    inv_n = 1.0 / float(HW)
    mean = jnp.sum(acc, axis=1, keepdims=True) * inv_n       # (Cout, 1)
    msq = jnp.sum(acc * acc, axis=1, keepdims=True) * inv_n  # (Cout, 1)
    var = jnp.maximum(msq - mean * mean, 0.0)
    return (acc - mean) * jax.lax.rsqrt(var + EPS)


def resnet_block_kernel(x_ref, w1_ref, w2_ref, out_ref, acc_ref, *, H, W):
    # x_ref/out_ref: (1, C, H*W)   w*_ref: (9, C, C)   acc_ref: (C, H*W) f32
    C = x_ref.shape[1]
    masks = _edge_masks(C, H, W)  # hoisted: computed once, reused by both stages

    # stage 1: reflect-pad -> conv3x3 -> InstanceNorm -> ReLU
    y1 = _conv3x3_instance_norm(x_ref[0].astype(jnp.float32),
                                w1_ref, acc_ref, masks, H, W)
    y1 = jnp.maximum(y1, 0.0)

    # stage 2: reflect-pad -> conv3x3 -> InstanceNorm  (never leaves VMEM/vregs)
    y2 = _conv3x3_instance_norm(y1, w2_ref, acc_ref, masks, H, W)

    # skip connection in f32; skip input re-read from VMEM (bounded live range).
    out_ref[0] = (x_ref[0].astype(jnp.float32) + y2).astype(out_ref.dtype)


def resnet_block_forward(x_nchw, w1, b1, w2, b2, *, compute_dtype=jnp.float32):
    """ResnetBlock forward (reflect pad, InstanceNorm2d(affine=False), ReLU).

    x_nchw : (N, C, H, W)
    w1, w2 : (C, C, 3, 3)  PyTorch Conv2d layout (out, in, kh, kw)
    b1, b2 : (C,) conv biases -- mathematically cancelled by the affine-free
             InstanceNorm mean subtraction, so unused by the kernel.
    compute_dtype : MXU operand dtype (jnp.bfloat16 halves activation VMEM and
             ~2x MXU throughput; IN statistics / ReLU / skip-add stay f32).
    """
    del b1, b2  # exact no-op under InstanceNorm2d(affine=False)
    N, C, H, W = x_nchw.shape
    HW = H * W

    # NCHW end-to-end; (N,C,H,W) -> (N,C,H*W) is a free contiguous reshape.
    xf = x_nchw.reshape(N, C, HW)

    # (Cout, Cin, 3, 3) -> (9, Cout, Cin), tap index k = ky*3 + kx.
    w1m = jnp.transpose(w1, (2, 3, 0, 1)).reshape(9, C, C).astype(compute_dtype)
    w2m = jnp.transpose(w2, (2, 3, 0, 1)).reshape(9, C, C).astype(compute_dtype)

    kernel = functools.partial(resnet_block_kernel, H=H, W=W)

    out = pl.pallas_call(
        kernel,
        out_shape=jax.ShapeDtypeStruct((N, C, HW), x_nchw.dtype),
        grid=(N,),
        in_specs=[
            pl.BlockSpec((1, C, HW), lambda n: (n, 0, 0)),
            pl.BlockSpec((9, C, C), lambda n: (0, 0, 0)),  # constant -> loaded once
            pl.BlockSpec((9, C, C), lambda n: (0, 0, 0)),
        ],
        out_specs=pl.BlockSpec((1, C, HW), lambda n: (n, 0, 0)),
        scratch_shapes=[pltpu.VMEM((C, HW), jnp.float32)],   # conv accumulator
        compiler_params=pltpu.CompilerParams(
            dimension_semantics=("parallel",),
            # Blocks here are tiny; budget generously but within v7x's 64 MiB.
            vmem_limit_bytes=32 * 1024 * 1024,
        ),
    )(xf, w1m, w2m)

    return out.reshape(N, C, H, W)


def _reference(x, w1, b1, w2, b2):
    """Pure-JAX reference (matches the PyTorch module, including the bias)."""
    def conv_in(inp, w, b):
        xp = jnp.pad(inp, ((0, 0), (0, 0), (1, 1), (1, 1)), mode="reflect")
        y = jax.lax.conv_general_dilated(
            xp, w, window_strides=(1, 1), padding="VALID",
            dimension_numbers=("NCHW", "OIHW", "NCHW"),
            precision=jax.lax.Precision.HIGHEST)
        y = y + b[None, :, None, None]
        mean = jnp.mean(y, axis=(2, 3), keepdims=True)
        var = jnp.mean((y - mean) ** 2, axis=(2, 3), keepdims=True)
        return (y - mean) * jax.lax.rsqrt(var + EPS)

    h = jnp.maximum(conv_in(x, w1, b1), 0.0)
    return x + conv_in(h, w2, b2)


if __name__ == "__main__":
    key = jax.random.PRNGKey(0)
    N, C, H, W = 2, 4, 16, 16

    k_x, k_w1, k_b1, k_w2, k_b2 = jax.random.split(key, 5)
    x = jax.random.normal(k_x, (N, C, H, W), dtype=jnp.float32)
    w1 = jax.random.normal(k_w1, (C, C, 3, 3), dtype=jnp.float32) * 0.1
    b1 = jax.random.normal(k_b1, (C,), dtype=jnp.float32) * 0.1
    w2 = jax.random.normal(k_w2, (C, C, 3, 3), dtype=jnp.float32) * 0.1
    b2 = jax.random.normal(k_b2, (C,), dtype=jnp.float32) * 0.1

    ref = _reference(x, w1, b1, w2, b2)

    # f32 MXU-operand path: tight check against the f32 reference.
    out = jax.jit(resnet_block_forward)(x, w1, b1, w2, b2)
    jax.block_until_ready(out)
    assert out.shape == (N, C, H, W)
    err = float(jnp.max(jnp.abs(out - ref)))
    assert err < 2e-3, f"f32 path: max abs error vs reference: {err}"

    # bf16 MXU-operand path (IN stats / skip-add stay f32): loose sanity bound
    # covering bf16 operand rounding through two conv+IN stages.
    out_bf16 = jax.jit(
        functools.partial(resnet_block_forward, compute_dtype=jnp.bfloat16)
    )(x, w1, b1, w2, b2)
    jax.block_until_ready(out_bf16)
    err_bf16 = float(jnp.max(jnp.abs(out_bf16 - ref)))
    assert err_bf16 < 1e-1, f"bf16 path: max abs error vs reference: {err_bf16}"

    print("KERNEL_OK")
</pallas_src>

<mosaic_0001>
module attributes {stable_mosaic.version = 11 : i64} {
  func.func @resnet_block_kernel(%arg0: i32, %arg1: memref<1x4x256xf32, #tpu.memory_space<vmem>>, %arg2: memref<9x4x4xf32, #tpu.memory_space<vmem>>, %arg3: memref<9x4x4xf32, #tpu.memory_space<vmem>>, %arg4: memref<1x4x256xf32, #tpu.memory_space<vmem>>, %arg5: memref<4x256xf32, #tpu.memory_space<vmem>>) attributes {dimension_semantics = [#tpu.dimension_semantics<parallel>], iteration_bounds = array<i64: 2>, scalar_prefetch = 0 : i64, scratch_operands = 1 : i64, tpu.core_type = #tpu.core_type<tc>, window_params = [{transform_indices = @transform_0, window_bounds = array<i64: 1, 4, 256>}, {pipeline_mode = #tpu.pipeline_mode<synchronous>, transform_indices = @transform_1, window_bounds = array<i64: 9, 4, 4>}, {pipeline_mode = #tpu.pipeline_mode<synchronous>, transform_indices = @transform_2, window_bounds = array<i64: 9, 4, 4>}, {transform_indices = @transform_3, window_bounds = array<i64: 1, 4, 256>}]} {
    %0 = tpu.iota {dimensions = array<i32: 1>} : vector<4x256xi32>
    %c16_i32 = arith.constant 16 : i32
    %1 = vector.broadcast %c16_i32 : i32 to vector<4x256xi32>
    %2 = arith.cmpi slt, %0, %1 : vector<4x256xi32>
    %c240_i32 = arith.constant 240 : i32
    %3 = vector.broadcast %c240_i32 : i32 to vector<4x256xi32>
    %4 = arith.cmpi sge, %0, %3 : vector<4x256xi32>
    %5 = arith.sitofp %0 : vector<4x256xi32> to vector<4x256xf32>
    %cst = arith.constant 1.600000e+01 : f32
    %6 = vector.broadcast %cst : f32 to vector<4x256xf32>
    %7 = arith.divf %5, %6 : vector<4x256xf32>
    %8 = math.floor %7 : vector<4x256xf32>
    %cst_0 = arith.constant 1.600000e+01 : f32
    %9 = vector.broadcast %cst_0 : f32 to vector<4x256xf32>
    %10 = arith.mulf %8, %9 : vector<4x256xf32>
    %11 = arith.subf %5, %10 : vector<4x256xf32>
    %cst_1 = arith.constant 5.000000e-01 : f32
    %12 = vector.broadcast %cst_1 : f32 to vector<4x256xf32>
    %13 = arith.cmpf olt, %11, %12 : vector<4x256xf32>
    %cst_2 = arith.constant 1.450000e+01 : f32
    %14 = vector.broadcast %cst_2 : f32 to vector<4x256xf32>
    %15 = arith.cmpf ogt, %11, %14 : vector<4x256xf32>
    %c0 = arith.constant 0 : index
    %c0_3 = arith.constant 0 : index
    %c0_4 = arith.constant 0 : index
    %16 = vector.load %arg1[%c0, %c0_3, %c0_4] : memref<1x4x256xf32, #tpu.memory_space<vmem>>, vector<1x4x256xf32>
    %17 = vector.shape_cast %16 : vector<1x4x256xf32> to vector<4x256xf32>
    %c16_i32_5 = arith.constant 16 : i32
    %18 = tpu.dynamic_rotate %17 by %c16_i32_5 dim 1 : vector<4x256xf32>, i32 -> vector<4x256xf32>
    %c240_i32_6 = arith.constant 240 : i32
    %19 = tpu.dynamic_rotate %17 by %c240_i32_6 dim 1 : vector<4x256xf32>, i32 -> vector<4x256xf32>
    %20 = arith.select %2, %19, %18 : vector<4x256xi1>, vector<4x256xf32>
    %21 = arith.select %4, %18, %19 : vector<4x256xi1>, vector<4x256xf32>
    %cst_7 = arith.constant 0.000000e+00 : f32
    %22 = vector.broadcast %cst_7 : f32 to vector<4x256xf32>
    %c0_8 = arith.constant 0 : index
    %c0_9 = arith.constant 0 : index
    %23 = vector.load %arg5[%c0_8, %c0_9] : memref<4x256xf32, #tpu.memory_space<vmem>>, vector<4x256xf32>
    tpu.vector_store %arg5[%c0_8, %c0_9], %22 {strides = array<i32>} : memref<4x256xf32, #tpu.memory_space<vmem>>, vector<4x256xf32>,
    %c1_i32 = arith.constant 1 : i32
    %24 = tpu.dynamic_rotate %20 by %c1_i32 dim 1 : vector<4x256xf32>, i32 -> vector<4x256xf32>
    %c255_i32 = arith.constant 255 : i32
    %25 = tpu.dynamic_rotate %20 by %c255_i32 dim 1 : vector<4x256xf32>, i32 -> vector<4x256xf32>
    %26 = arith.select %13, %25, %24 : vector<4x256xi1>, vector<4x256xf32>
    %27 = arith.select %15, %24, %25 : vector<4x256xi1>, vector<4x256xf32>
    %c0_10 = arith.constant 0 : index
    %c0_11 = arith.constant 0 : index
    %28 = vector.load %arg5[%c0_10, %c0_11] : memref<4x256xf32, #tpu.memory_space<vmem>>, vector<4x256xf32>
    %c0_12 = arith.constant 0 : index
    %c0_13 = arith.constant 0 : index
    %c0_14 = arith.constant 0 : index
    %29 = vector.load %arg2[%c0_12, %c0_13, %c0_14] : memref<9x4x4xf32, #tpu.memory_space<vmem>>, vector<1x4x4xf32>
    %30 = vector.shape_cast %29 : vector<1x4x4xf32> to vector<4x4xf32>
    %cst_15 = arith.constant dense<0.000000e+00> : vector<4x256xf32>
    %31 = tpu.matmul %30, %26, %cst_15 {dimension_numbers = #tpu.dot_dimension_numbers<[1], [0], [0], [1], [0, 0, 1, 1], [], []>} : vector<4x4xf32>, vector<4x256xf32>, vector<4x256xf32> -> vector<4x256xf32>
    %32 = arith.addf %28, %31 : vector<4x256xf32>
    %c0_16 = arith.constant 0 : index
    %c0_17 = arith.constant 0 : index
    %33 = vector.load %arg5[%c0_16, %c0_17] : memref<4x256xf32, #tpu.memory_space<vmem>>, vector<4x256xf32>
    tpu.vector_store %arg5[%c0_16, %c0_17], %32 {strides = array<i32>} : memref<4x256xf32, #tpu.memory_space<vmem>>, vector<4x256xf32>,
    %c0_18 = arith.constant 0 : index
    %c0_19 = arith.constant 0 : index
    %34 = vector.load %arg5[%c0_18, %c0_19] : memref<4x256xf32, #tpu.memory_space<vmem>>, vector<4x256xf32>
    %c1 = arith.constant 1 : index
    %c0_20 = arith.constant 0 : index
    %c0_21 = arith.constant 0 : index
    %35 = vector.load %arg2[%c1, %c0_20, %c0_21] : memref<9x4x4xf32, #tpu.memory_space<vmem>>, vector<1x4x4xf32>
    %36 = vector.shape_cast %35 : vector<1x4x4xf32> to vector<4x4xf32>
    %cst_22 = arith.constant dense<0.000000e+00> : vector<4x256xf32>
    %37 = tpu.matmul %36, %20, %cst_22 {dimension_numbers = #tpu.dot_dimension_numbers<[1], [0], [0], [1], [0, 0, 1, 1], [], []>} : vector<4x4xf32>, vector<4x256xf32>, vector<4x256xf32> -> vector<4x256xf32>
    %38 = arith.addf %34, %37 : vector<4x256xf32>
    %c0_23 = arith.constant 0 : index
    %c0_24 = arith.constant 0 : index
    %39 = vector.load %arg5[%c0_23, %c0_24] : memref<4x256xf32, #tpu.memory_space<vmem>>, vector<4x256xf32>
    tpu.vector_store %arg5[%c0_23, %c0_24], %38 {strides = array<i32>} : memref<4x256xf32, #tpu.memory_space<vmem>>, vector<4x256xf32>,
    %c0_25 = arith.constant 0 : index
    %c0_26 = arith.constant 0 : index
    %40 = vector.load %arg5[%c0_25, %c0_26] : memref<4x256xf32, #tpu.memory_space<vmem>>, vector<4x256xf32>
    %c2 = arith.constant 2 : index
    %c0_27 = arith.constant 0 : index
    %c0_28 = arith.constant 0 : index
    %41 = vector.load %arg2[%c2, %c0_27, %c0_28] : memref<9x4x4xf32, #tpu.memory_space<vmem>>, vector<1x4x4xf32>
    %42 = vector.shape_cast %41 : vector<1x4x4xf32> to vector<4x4xf32>
    %cst_29 = arith.constant dense<0.000000e+00> : vector<4x256xf32>
    %43 = tpu.matmul %42, %27, %cst_29 {dimension_numbers = #tpu.dot_dimension_numbers<[1], [0], [0], [1], [0, 0, 1, 1], [], []>} : vector<4x4xf32>, vector<4x256xf32>, vector<4x256xf32> -> vector<4x256xf32>
    %44 = arith.addf %40, %43 : vector<4x256xf32>
    %c0_30 = arith.constant 0 : index
    %c0_31 = arith.constant 0 : index
    %45 = vector.load %arg5[%c0_30, %c0_31] : memref<4x256xf32, #tpu.memory_space<vmem>>, vector<4x256xf32>
    tpu.vector_store %arg5[%c0_30, %c0_31], %44 {strides = array<i32>} : memref<4x256xf32, #tpu.memory_space<vmem>>, vector<4x256xf32>,
    %c1_i32_32 = arith.constant 1 : i32
    %46 = tpu.dynamic_rotate %17 by %c1_i32_32 dim 1 : vector<4x256xf32>, i32 -> vector<4x256xf32>
    %c255_i32_33 = arith.constant 255 : i32
    %47 = tpu.dynamic_rotate %17 by %c255_i32_33 dim 1 : vector<4x256xf32>, i32 -> vector<4x256xf32>
    %48 = arith.select %13, %47, %46 : vector<4x256xi1>, vector<4x256xf32>
    %49 = arith.select %15, %46, %47 : vector<4x256xi1>, vector<4x256xf32>
    %c0_34 = arith.constant 0 : index
    %c0_35 = arith.constant 0 : index
    %50 = vector.load %arg5[%c0_34, %c0_35] : memref<4x256xf32, #tpu.memory_space<vmem>>, vector<4x256xf32>
    %c3 = arith.constant 3 : index
    %c0_36 = arith.constant 0 : index
    %c0_37 = arith.constant 0 : index
    %51 = vector.load %arg2[%c3, %c0_36, %c0_37] : memref<9x4x4xf32, #tpu.memory_space<vmem>>, vector<1x4x4xf32>
    %52 = vector.shape_cast %51 : vector<1x4x4xf32> to vector<4x4xf32>
    %cst_38 = arith.constant dense<0.000000e+00> : vector<4x256xf32>
    %53 = tpu.matmul %52, %48, %cst_38 {dimension_numbers = #tpu.dot_dimension_numbers<[1], [0], [0], [1], [0, 0, 1, 1], [], []>} : vector<4x4xf32>, vector<4x256xf32>, vector<4x256xf32> -> vector<4x256xf32>
    %54 = arith.addf %50, %53 : vector<4x256xf32>
    %c0_39 = arith.constant 0 : index
    %c0_40 = arith.constant 0 : index
    %55 = vector.load %arg5[%c0_39, %c0_40] : memref<4x256xf32, #tpu.memory_space<vmem>>, vector<4x256xf32>
    tpu.vector_store %arg5[%c0_39, %c0_40], %54 {strides = array<i32>} : memref<4x256xf32, #tpu.memory_space<vmem>>, vector<4x256xf32>,
    %c0_41 = arith.constant 0 : index
    %c0_42 = arith.constant 0 : index
    %56 = vector.load %arg5[%c0_41, %c0_42] : memref<4x256xf32, #tpu.memory_space<vmem>>, vector<4x256xf32>
    %c4 = arith.constant 4 : index
    %c0_43 = arith.constant 0 : index
    %c0_44 = arith.constant 0 : index
    %57 = vector.load %arg2[%c4, %c0_43, %c0_44] : memref<9x4x4xf32, #tpu.memory_space<vmem>>, vector<1x4x4xf32>
    %58 = vector.shape_cast %57 : vector<1x4x4xf32> to vector<4x4xf32>
    %cst_45 = arith.constant dense<0.000000e+00> : vector<4x256xf32>
    %59 = tpu.matmul %58, %17, %cst_45 {dimension_numbers = #tpu.dot_dimension_numbers<[1], [0], [0], [1], [0, 0, 1, 1], [], []>} : vector<4x4xf32>, vector<4x256xf32>, vector<4x256xf32> -> vector<4x256xf32>
    %60 = arith.addf %56, %59 : vector<4x256xf32>
    %c0_46 = arith.constant 0 : index
    %c0_47 = arith.constant 0 : index
    %61 = vector.load %arg5[%c0_46, %c0_47] : memref<4x256xf32, #tpu.memory_space<vmem>>, vector<4x256xf32>
    tpu.vector_store %arg5[%c0_46, %c0_47], %60 {strides = array<i32>} : memref<4x256xf32, #tpu.memory_space<vmem>>, vector<4x256xf32>,
    %c0_48 = arith.constant 0 : index
    %c0_49 = arith.constant 0 : index
    %62 = vector.load %arg5[%c0_48, %c0_49] : memref<4x256xf32, #tpu.memory_space<vmem>>, vector<4x256xf32>
    %c5 = arith.constant 5 : index
    %c0_50 = arith.constant 0 : index
    %c0_51 = arith.constant 0 : index
    %63 = vector.load %arg2[%c5, %c0_50, %c0_51] : memref<9x4x4xf32, #tpu.memory_space<vmem>>, vector<1x4x4xf32>
    %64 = vector.shape_cast %63 : vector<1x4x4xf32> to vector<4x4xf32>
    %cst_52 = arith.constant dense<0.000000e+00> : vector<4x256xf32>
    %65 = tpu.matmul %64, %49, %cst_52 {dimension_numbers = #tpu.dot_dimension_numbers<[1], [0], [0], [1], [0, 0, 1, 1], [], []>} : vector<4x4xf32>, vector<4x256xf32>, vector<4x256xf32> -> vector<4x256xf32>
    %66 = arith.addf %62, %65 : vector<4x256xf32>
    %c0_53 = arith.constant 0 : index
    %c0_54 = arith.constant 0 : index
    %67 = vector.load %arg5[%c0_53, %c0_54] : memref<4x256xf32, #tpu.memory_space<vmem>>, vector<4x256xf32>
    tpu.vector_store %arg5[%c0_53, %c0_54], %66 {strides = array<i32>} : memref<4x256xf32, #tpu.memory_space<vmem>>, vector<4x256xf32>,
    %c1_i32_55 = arith.constant 1 : i32
    %68 = tpu.dynamic_rotate %21 by %c1_i32_55 dim 1 : vector<4x256xf32>, i32 -> vector<4x256xf32>
    %c255_i32_56 = arith.constant 255 : i32
    %69 = tpu.dynamic_rotate %21 by %c255_i32_56 dim 1 : vector<4x256xf32>, i32 -> vector<4x256xf32>
    %70 = arith.select %13, %69, %68 : vector<4x256xi1>, vector<4x256xf32>
    %71 = arith.select %15, %68, %69 : vector<4x256xi1>, vector<4x256xf32>
    %c0_57 = arith.constant 0 : index
    %c0_58 = arith.constant 0 : index
    %72 = vector.load %arg5[%c0_57, %c0_58] : memref<4x256xf32, #tpu.memory_space<vmem>>, vector<4x256xf32>
    %c6 = arith.constant 6 : index
    %c0_59 = arith.constant 0 : index
    %c0_60 = arith.constant 0 : index
    %73 = vector.load %arg2[%c6, %c0_59, %c0_60] : memref<9x4x4xf32, #tpu.memory_space<vmem>>, vector<1x4x4xf32>
    %74 = vector.shape_cast %73 : vector<1x4x4xf32> to vector<4x4xf32>
    %cst_61 = arith.constant dense<0.000000e+00> : vector<4x256xf32>
    %75 = tpu.matmul %74, %70, %cst_61 {dimension_numbers = #tpu.dot_dimension_numbers<[1], [0], [0], [1], [0, 0, 1, 1], [], []>} : vector<4x4xf32>, vector<4x256xf32>, vector<4x256xf32> -> vector<4x256xf32>
    %76 = arith.addf %72, %75 : vector<4x256xf32>
    %c0_62 = arith.constant 0 : index
    %c0_63 = arith.constant 0 : index
    %77 = vector.load %arg5[%c0_62, %c0_63] : memref<4x256xf32, #tpu.memory_space<vmem>>, vector<4x256xf32>
    tpu.vector_store %arg5[%c0_62, %c0_63], %76 {strides = array<i32>} : memref<4x256xf32, #tpu.memory_space<vmem>>, vector<4x256xf32>,
    %c0_64 = arith.constant 0 : index
    %c0_65 = arith.constant 0 : index
    %78 = vector.load %arg5[%c0_64, %c0_65] : memref<4x256xf32, #tpu.memory_space<vmem>>, vector<4x256xf32>
    %c7 = arith.constant 7 : index
    %c0_66 = arith.constant 0 : index
    %c0_67 = arith.constant 0 : index
    %79 = vector.load %arg2[%c7, %c0_66, %c0_67] : memref<9x4x4xf32, #tpu.memory_space<vmem>>, vector<1x4x4xf32>
    %80 = vector.shape_cast %79 : vector<1x4x4xf32> to vector<4x4xf32>
    %cst_68 = arith.constant dense<0.000000e+00> : vector<4x256xf32>
    %81 = tpu.matmul %80, %21, %cst_68 {dimension_numbers = #tpu.dot_dimension_numbers<[1], [0], [0], [1], [0, 0, 1, 1], [], []>} : vector<4x4xf32>, vector<4x256xf32>, vector<4x256xf32> -> vector<4x256xf32>
    %82 = arith.addf %78, %81 : vector<4x256xf32>
    %c0_69 = arith.constant 0 : index
    %c0_70 = arith.constant 0 : index
    %83 = vector.load %arg5[%c0_69, %c0_70] : memref<4x256xf32, #tpu.memory_space<vmem>>, vector<4x256xf32>
    tpu.vector_store %arg5[%c0_69, %c0_70], %82 {strides = array<i32>} : memref<4x256xf32, #tpu.memory_space<vmem>>, vector<4x256xf32>,
    %c0_71 = arith.constant 0 : index
    %c0_72 = arith.constant 0 : index
    %84 = vector.load %arg5[%c0_71, %c0_72] : memref<4x256xf32, #tpu.memory_space<vmem>>, vector<4x256xf32>
    %c8 = arith.constant 8 : index
    %c0_73 = arith.constant 0 : index
    %c0_74 = arith.constant 0 : index
    %85 = vector.load %arg2[%c8, %c0_73, %c0_74] : memref<9x4x4xf32, #tpu.memory_space<vmem>>, vector<1x4x4xf32>
    %86 = vector.shape_cast %85 : vector<1x4x4xf32> to vector<4x4xf32>
    %cst_75 = arith.constant dense<0.000000e+00> : vector<4x256xf32>
    %87 = tpu.matmul %86, %71, %cst_75 {dimension_numbers = #tpu.dot_dimension_numbers<[1], [0], [0], [1], [0, 0, 1, 1], [], []>} : vector<4x4xf32>, vector<4x256xf32>, vector<4x256xf32> -> vector<4x256xf32>
    %88 = arith.addf %84, %87 : vector<4x256xf32>
    %c0_76 = arith.constant 0 : index
    %c0_77 = arith.constant 0 : index
    %89 = vector.load %arg5[%c0_76, %c0_77] : memref<4x256xf32, #tpu.memory_space<vmem>>, vector<4x256xf32>
    tpu.vector_store %arg5[%c0_76, %c0_77], %88 {strides = array<i32>} : memref<4x256xf32, #tpu.memory_space<vmem>>, vector<4x256xf32>,
    %c0_78 = arith.constant 0 : index
    %c0_79 = arith.constant 0 : index
    %90 = vector.load %arg5[%c0_78, %c0_79] : memref<4x256xf32, #tpu.memory_space<vmem>>, vector<4x256xf32>
    %cst_80 = arith.constant dense<0.000000e+00> : vector<4xf32>
    %91 = vector.multi_reduction <add>, %90, %cst_80 [1] : vector<4x256xf32> to vector<4xf32>
    %92 = vector.shape_cast %91 : vector<4xf32> to vector<4x1xf32>
    %cst_81 = arith.constant 3.906250e-03 : f32
    %93 = vector.broadcast %cst_81 : f32 to vector<4x1xf32>
    %94 = arith.mulf %92, %93 : vector<4x1xf32>
    %95 = arith.mulf %90, %90 : vector<4x256xf32>
    %cst_82 = arith.constant dense<0.000000e+00> : vector<4xf32>
    %96 = vector.multi_reduction <add>, %95, %cst_82 [1] : vector<4x256xf32> to vector<4xf32>
    %97 = vector.shape_cast %96 : vector<4xf32> to vector<4x1xf32>
    %cst_83 = arith.constant 3.906250e-03 : f32
    %98 = vector.broadcast %cst_83 : f32 to vector<4x1xf32>
    %99 = arith.mulf %97, %98 : vector<4x1xf32>
    %100 = arith.mulf %94, %94 : vector<4x1xf32>
    %101 = arith.subf %99, %100 : vector<4x1xf32>
    %cst_84 = arith.constant 0.000000e+00 : f32
    %102 = vector.broadcast %cst_84 : f32 to vector<4x1xf32>
    %103 = arith.maximumf %101, %102 : vector<4x1xf32>
    %104 = vector.broadcast %94 : vector<4x1xf32> to vector<4x256xf32>
    %105 = arith.subf %90, %104 : vector<4x256xf32>
    %cst_85 = arith.constant 9.99999974E-6 : f32
    %106 = vector.broadcast %cst_85 : f32 to vector<4x1xf32>
    %107 = arith.addf %103, %106 : vector<4x1xf32>
    %108 = math.rsqrt %107 : vector<4x1xf32>
    %109 = vector.broadcast %108 : vector<4x1xf32> to vector<4x256xf32>
    %110 = arith.mulf %105, %109 : vector<4x256xf32>
    %cst_86 = arith.constant 0.000000e+00 : f32
    %111 = vector.broadcast %cst_86 : f32 to vector<4x256xf32>
    %112 = arith.maximumf %110, %111 : vector<4x256xf32>
    %c16_i32_87 = arith.constant 16 : i32
    %113 = tpu.dynamic_rotate %112 by %c16_i32_87 dim 1 : vector<4x256xf32>, i32 -> vector<4x256xf32>
    %c240_i32_88 = arith.constant 240 : i32
    %114 = tpu.dynamic_rotate %112 by %c240_i32_88 dim 1 : vector<4x256xf32>, i32 -> vector<4x256xf32>
    %115 = arith.select %2, %114, %113 : vector<4x256xi1>, vector<4x256xf32>
    %116 = arith.select %4, %113, %114 : vector<4x256xi1>, vector<4x256xf32>
    %cst_89 = arith.constant 0.000000e+00 : f32
    %117 = vector.broadcast %cst_89 : f32 to vector<4x256xf32>
    %c0_90 = arith.constant 0 : index
    %c0_91 = arith.constant 0 : index
    %118 = vector.load %arg5[%c0_90, %c0_91] : memref<4x256xf32, #tpu.memory_space<vmem>>, vector<4x256xf32>
    tpu.vector_store %arg5[%c0_90, %c0_91], %117 {strides = array<i32>} : memref<4x256xf32, #tpu.memory_space<vmem>>, vector<4x256xf32>,
    %c1_i32_92 = arith.constant 1 : i32
    %119 = tpu.dynamic_rotate %115 by %c1_i32_92 dim 1 : vector<4x256xf32>, i32 -> vector<4x256xf32>
    %c255_i32_93 = arith.constant 255 : i32
    %120 = tpu.dynamic_rotate %115 by %c255_i32_93 dim 1 : vector<4x256xf32>, i32 -> vector<4x256xf32>
    %121 = arith.select %13, %120, %119 : vector<4x256xi1>, vector<4x256xf32>
    %122 = arith.select %15, %119, %120 : vector<4x256xi1>, vector<4x256xf32>
    %c0_94 = arith.constant 0 : index
    %c0_95 = arith.constant 0 : index
    %123 = vector.load %arg5[%c0_94, %c0_95] : memref<4x256xf32, #tpu.memory_space<vmem>>, vector<4x256xf32>
    %c0_96 = arith.constant 0 : index
    %c0_97 = arith.constant 0 : index
    %c0_98 = arith.constant 0 : index
    %124 = vector.load %arg3[%c0_96, %c0_97, %c0_98] : memref<9x4x4xf32, #tpu.memory_space<vmem>>, vector<1x4x4xf32>
    %125 = vector.shape_cast %124 : vector<1x4x4xf32> to vector<4x4xf32>
    %cst_99 = arith.constant dense<0.000000e+00> : vector<4x256xf32>
    %126 = tpu.matmul %125, %121, %cst_99 {dimension_numbers = #tpu.dot_dimension_numbers<[1], [0], [0], [1], [0, 0, 1, 1], [], []>} : vector<4x4xf32>, vector<4x256xf32>, vector<4x256xf32> -> vector<4x256xf32>
    %127 = arith.addf %123, %126 : vector<4x256xf32>
    %c0_100 = arith.constant 0 : index
    %c0_101 = arith.constant 0 : index
    %128 = vector.load %arg5[%c0_100, %c0_101] : memref<4x256xf32, #tpu.memory_space<vmem>>, vector<4x256xf32>
    tpu.vector_store %arg5[%c0_100, %c0_101], %127 {strides = array<i32>} : memref<4x256xf32, #tpu.memory_space<vmem>>, vector<4x256xf32>,
    %c0_102 = arith.constant 0 : index
    %c0_103 = arith.constant 0 : index
    %129 = vector.load %arg5[%c0_102, %c0_103] : memref<4x256xf32, #tpu.memory_space<vmem>>, vector<4x256xf32>
    %c1_104 = arith.constant 1 : index
    %c0_105 = arith.constant 0 : index
    %c0_106 = arith.constant 0 : index
    %130 = vector.load %arg3[%c1_104, %c0_105, %c0_106] : memref<9x4x4xf32, #tpu.memory_space<vmem>>, vector<1x4x4xf32>
    %131 = vector.shape_cast %130 : vector<1x4x4xf32> to vector<4x4xf32>
    %cst_107 = arith.constant dense<0.000000e+00> : vector<4x256xf32>
    %132 = tpu.matmul %131, %115, %cst_107 {dimension_numbers = #tpu.dot_dimension_numbers<[1], [0], [0], [1], [0, 0, 1, 1], [], []>} : vector<4x4xf32>, vector<4x256xf32>, vector<4x256xf32> -> vector<4x256xf32>
    %133 = arith.addf %129, %132 : vector<4x256xf32>
    %c0_108 = arith.constant 0 : index
    %c0_109 = arith.constant 0 : index
    %134 = vector.load %arg5[%c0_108, %c0_109] : memref<4x256xf32, #tpu.memory_space<vmem>>, vector<4x256xf32>
    tpu.vector_store %arg5[%c0_108, %c0_109], %133 {strides = array<i32>} : memref<4x256xf32, #tpu.memory_space<vmem>>, vector<4x256xf32>,
    %c0_110 = arith.constant 0 : index
    %c0_111 = arith.constant 0 : index
    %135 = vector.load %arg5[%c0_110, %c0_111] : memref<4x256xf32, #tpu.memory_space<vmem>>, vector<4x256xf32>
    %c2_112 = arith.constant 2 : index
    %c0_113 = arith.constant 0 : index
    %c0_114 = arith.constant 0 : index
    %136 = vector.load %arg3[%c2_112, %c0_113, %c0_114] : memref<9x4x4xf32, #tpu.memory_space<vmem>>, vector<1x4x4xf32>
    %137 = vector.shape_cast %136 : vector<1x4x4xf32> to vector<4x4xf32>
    %cst_115 = arith.constant dense<0.000000e+00> : vector<4x256xf32>
    %138 = tpu.matmul %137, %122, %cst_115 {dimension_numbers = #tpu.dot_dimension_numbers<[1], [0], [0], [1], [0, 0, 1, 1], [], []>} : vector<4x4xf32>, vector<4x256xf32>, vector<4x256xf32> -> vector<4x256xf32>
    %139 = arith.addf %135, %138 : vector<4x256xf32>
    %c0_116 = arith.constant 0 : index
    %c0_117 = arith.constant 0 : index
    %140 = vector.load %arg5[%c0_116, %c0_117] : memref<4x256xf32, #tpu.memory_space<vmem>>, vector<4x256xf32>
    tpu.vector_store %arg5[%c0_116, %c0_117], %139 {strides = array<i32>} : memref<4x256xf32, #tpu.memory_space<vmem>>, vector<4x256xf32>,
    %c1_i32_118 = arith.constant 1 : i32
    %141 = tpu.dynamic_rotate %112 by %c1_i32_118 dim 1 : vector<4x256xf32>, i32 -> vector<4x256xf32>
    %c255_i32_119 = arith.constant 255 : i32
    %142 = tpu.dynamic_rotate %112 by %c255_i32_119 dim 1 : vector<4x256xf32>, i32 -> vector<4x256xf32>
    %143 = arith.select %13, %142, %141 : vector<4x256xi1>, vector<4x256xf32>
    %144 = arith.select %15, %141, %142 : vector<4x256xi1>, vector<4x256xf32>
    %c0_120 = arith.constant 0 : index
    %c0_121 = arith.constant 0 : index
    %145 = vector.load %arg5[%c0_120, %c0_121] : memref<4x256xf32, #tpu.memory_space<vmem>>, vector<4x256xf32>
    %c3_122 = arith.constant 3 : index
    %c0_123 = arith.constant 0 : index
    %c0_124 = arith.constant 0 : index
    %146 = vector.load %arg3[%c3_122, %c0_123, %c0_124] : memref<9x4x4xf32, #tpu.memory_space<vmem>>, vector<1x4x4xf32>
    %147 = vector.shape_cast %146 : vector<1x4x4xf32> to vector<4x4xf32>
    %cst_125 = arith.constant dense<0.000000e+00> : vector<4x256xf32>
    %148 = tpu.matmul %147, %143, %cst_125 {dimension_numbers = #tpu.dot_dimension_numbers<[1], [0], [0], [1], [0, 0, 1, 1], [], []>} : vector<4x4xf32>, vector<4x256xf32>, vector<4x256xf32> -> vector<4x256xf32>
    %149 = arith.addf %145, %148 : vector<4x256xf32>
    %c0_126 = arith.constant 0 : index
    %c0_127 = arith.constant 0 : index
    %150 = vector.load %arg5[%c0_126, %c0_127] : memref<4x256xf32, #tpu.memory_space<vmem>>, vector<4x256xf32>
    tpu.vector_store %arg5[%c0_126, %c0_127], %149 {strides = array<i32>} : memref<4x256xf32, #tpu.memory_space<vmem>>, vector<4x256xf32>,
    %c0_128 = arith.constant 0 : index
    %c0_129 = arith.constant 0 : index
    %151 = vector.load %arg5[%c0_128, %c0_129] : memref<4x256xf32, #tpu.memory_space<vmem>>, vector<4x256xf32>
    %c4_130 = arith.constant 4 : index
    %c0_131 = arith.constant 0 : index
    %c0_132 = arith.constant 0 : index
    %152 = vector.load %arg3[%c4_130, %c0_131, %c0_132] : memref<9x4x4xf32, #tpu.memory_space<vmem>>, vector<1x4x4xf32>
    %153 = vector.shape_cast %152 : vector<1x4x4xf32> to vector<4x4xf32>
    %cst_133 = arith.constant dense<0.000000e+00> : vector<4x256xf32>
    %154 = tpu.matmul %153, %112, %cst_133 {dimension_numbers = #tpu.dot_dimension_numbers<[1], [0], [0], [1], [0, 0, 1, 1], [], []>} : vector<4x4xf32>, vector<4x256xf32>, vector<4x256xf32> -> vector<4x256xf32>
    %155 = arith.addf %151, %154 : vector<4x256xf32>
    %c0_134 = arith.constant 0 : index
    %c0_135 = arith.constant 0 : index
    %156 = vector.load %arg5[%c0_134, %c0_135] : memref<4x256xf32, #tpu.memory_space<vmem>>, vector<4x256xf32>
    tpu.vector_store %arg5[%c0_134, %c0_135], %155 {strides = array<i32>} : memref<4x256xf32, #tpu.memory_space<vmem>>, vector<4x256xf32>,
    %c0_136 = arith.constant 0 : index
    %c0_137 = arith.constant 0 : index
    %157 = vector.load %arg5[%c0_136, %c0_137] : memref<4x256xf32, #tpu.memory_space<vmem>>, vector<4x256xf32>
    %c5_138 = arith.constant 5 : index
    %c0_139 = arith.constant 0 : index
    %c0_140 = arith.constant 0 : index
    %158 = vector.load %arg3[%c5_138, %c0_139, %c0_140] : memref<9x4x4xf32, #tpu.memory_space<vmem>>, vector<1x4x4xf32>
    %159 = vector.shape_cast %158 : vector<1x4x4xf32> to vector<4x4xf32>
    %cst_141 = arith.constant dense<0.000000e+00> : vector<4x256xf32>
    %160 = tpu.matmul %159, %144, %cst_141 {dimension_numbers = #tpu.dot_dimension_numbers<[1], [0], [0], [1], [0, 0, 1, 1], [], []>} : vector<4x4xf32>, vector<4x256xf32>, vector<4x256xf32> -> vector<4x256xf32>
    %161 = arith.addf %157, %160 : vector<4x256xf32>
    %c0_142 = arith.constant 0 : index
    %c0_143 = arith.constant 0 : index
    %162 = vector.load %arg5[%c0_142, %c0_143] : memref<4x256xf32, #tpu.memory_space<vmem>>, vector<4x256xf32>
    tpu.vector_store %arg5[%c0_142, %c0_143], %161 {strides = array<i32>} : memref<4x256xf32, #tpu.memory_space<vmem>>, vector<4x256xf32>,
    %c1_i32_144 = arith.constant 1 : i32
    %163 = tpu.dynamic_rotate %116 by %c1_i32_144 dim 1 : vector<4x256xf32>, i32 -> vector<4x256xf32>
    %c255_i32_145 = arith.constant 255 : i32
    %164 = tpu.dynamic_rotate %116 by %c255_i32_145 dim 1 : vector<4x256xf32>, i32 -> vector<4x256xf32>
    %165 = arith.select %13, %164, %163 : vector<4x256xi1>, vector<4x256xf32>
    %166 = arith.select %15, %163, %164 : vector<4x256xi1>, vector<4x256xf32>
    %c0_146 = arith.constant 0 : index
    %c0_147 = arith.constant 0 : index
    %167 = vector.load %arg5[%c0_146, %c0_147] : memref<4x256xf32, #tpu.memory_space<vmem>>, vector<4x256xf32>
    %c6_148 = arith.constant 6 : index
    %c0_149 = arith.constant 0 : index
    %c0_150 = arith.constant 0 : index
    %168 = vector.load %arg3[%c6_148, %c0_149, %c0_150] : memref<9x4x4xf32, #tpu.memory_space<vmem>>, vector<1x4x4xf32>
    %169 = vector.shape_cast %168 : vector<1x4x4xf32> to vector<4x4xf32>
    %cst_151 = arith.constant dense<0.000000e+00> : vector<4x256xf32>
    %170 = tpu.matmul %169, %165, %cst_151 {dimension_numbers = #tpu.dot_dimension_numbers<[1], [0], [0], [1], [0, 0, 1, 1], [], []>} : vector<4x4xf32>, vector<4x256xf32>, vector<4x256xf32> -> vector<4x256xf32>
    %171 = arith.addf %167, %170 : vector<4x256xf32>
    %c0_152 = arith.constant 0 : index
    %c0_153 = arith.constant 0 : index
    %172 = vector.load %arg5[%c0_152, %c0_153] : memref<4x256xf32, #tpu.memory_space<vmem>>, vector<4x256xf32>
    tpu.vector_store %arg5[%c0_152, %c0_153], %171 {strides = array<i32>} : memref<4x256xf32, #tpu.memory_space<vmem>>, vector<4x256xf32>,
    %c0_154 = arith.constant 0 : index
    %c0_155 = arith.constant 0 : index
    %173 = vector.load %arg5[%c0_154, %c0_155] : memref<4x256xf32, #tpu.memory_space<vmem>>, vector<4x256xf32>
    %c7_156 = arith.constant 7 : index
    %c0_157 = arith.constant 0 : index
    %c0_158 = arith.constant 0 : index
    %174 = vector.load %arg3[%c7_156, %c0_157, %c0_158] : memref<9x4x4xf32, #tpu.memory_space<vmem>>, vector<1x4x4xf32>
    %175 = vector.shape_cast %174 : vector<1x4x4xf32> to vector<4x4xf32>
    %cst_159 = arith.constant dense<0.000000e+00> : vector<4x256xf32>
    %176 = tpu.matmul %175, %116, %cst_159 {dimension_numbers = #tpu.dot_dimension_numbers<[1], [0], [0], [1], [0, 0, 1, 1], [], []>} : vector<4x4xf32>, vector<4x256xf32>, vector<4x256xf32> -> vector<4x256xf32>
    %177 = arith.addf %173, %176 : vector<4x256xf32>
    %c0_160 = arith.constant 0 : index
    %c0_161 = arith.constant 0 : index
    %178 = vector.load %arg5[%c0_160, %c0_161] : memref<4x256xf32, #tpu.memory_space<vmem>>, vector<4x256xf32>
    tpu.vector_store %arg5[%c0_160, %c0_161], %177 {strides = array<i32>} : memref<4x256xf32, #tpu.memory_space<vmem>>, vector<4x256xf32>,
    %c0_162 = arith.constant 0 : index
    %c0_163 = arith.constant 0 : index
    %179 = vector.load %arg5[%c0_162, %c0_163] : memref<4x256xf32, #tpu.memory_space<vmem>>, vector<4x256xf32>
    %c8_164 = arith.constant 8 : index
    %c0_165 = arith.constant 0 : index
    %c0_166 = arith.constant 0 : index
    %180 = vector.load %arg3[%c8_164, %c0_165, %c0_166] : memref<9x4x4xf32, #tpu.memory_space<vmem>>, vector<1x4x4xf32>
    %181 = vector.shape_cast %180 : vector<1x4x4xf32> to vector<4x4xf32>
    %cst_167 = arith.constant dense<0.000000e+00> : vector<4x256xf32>
    %182 = tpu.matmul %181, %166, %cst_167 {dimension_numbers = #tpu.dot_dimension_numbers<[1], [0], [0], [1], [0, 0, 1, 1], [], []>} : vector<4x4xf32>, vector<4x256xf32>, vector<4x256xf32> -> vector<4x256xf32>
    %183 = arith.addf %179, %182 : vector<4x256xf32>
    %c0_168 = arith.constant 0 : index
    %c0_169 = arith.constant 0 : index
    %184 = vector.load %arg5[%c0_168, %c0_169] : memref<4x256xf32, #tpu.memory_space<vmem>>, vector<4x256xf32>
    tpu.vector_store %arg5[%c0_168, %c0_169], %183 {strides = array<i32>} : memref<4x256xf32, #tpu.memory_space<vmem>>, vector<4x256xf32>,
    %c0_170 = arith.constant 0 : index
    %c0_171 = arith.constant 0 : index
    %185 = vector.load %arg5[%c0_170, %c0_171] : memref<4x256xf32, #tpu.memory_space<vmem>>, vector<4x256xf32>
    %cst_172 = arith.constant dense<0.000000e+00> : vector<4xf32>
    %186 = vector.multi_reduction <add>, %185, %cst_172 [1] : vector<4x256xf32> to vector<4xf32>
    %187 = vector.shape_cast %186 : vector<4xf32> to vector<4x1xf32>
    %cst_173 = arith.constant 3.906250e-03 : f32
    %188 = vector.broadcast %cst_173 : f32 to vector<4x1xf32>
    %189 = arith.mulf %187, %188 : vector<4x1xf32>
    %190 = arith.mulf %185, %185 : vector<4x256xf32>
    %cst_174 = arith.constant dense<0.000000e+00> : vector<4xf32>
    %191 = vector.multi_reduction <add>, %190, %cst_174 [1] : vector<4x256xf32> to vector<4xf32>
    %192 = vector.shape_cast %191 : vector<4xf32> to vector<4x1xf32>
    %cst_175 = arith.constant 3.906250e-03 : f32
    %193 = vector.broadcast %cst_175 : f32 to vector<4x1xf32>
    %194 = arith.mulf %192, %193 : vector<4x1xf32>
    %195 = arith.mulf %189, %189 : vector<4x1xf32>
    %196 = arith.subf %194, %195 : vector<4x1xf32>
    %cst_176 = arith.constant 0.000000e+00 : f32
    %197 = vector.broadcast %cst_176 : f32 to vector<4x1xf32>
    %198 = arith.maximumf %196, %197 : vector<4x1xf32>
    %199 = vector.broadcast %189 : vector<4x1xf32> to vector<4x256xf32>
    %200 = arith.subf %185, %199 : vector<4x256xf32>
    %cst_177 = arith.constant 9.99999974E-6 : f32
    %201 = vector.broadcast %cst_177 : f32 to vector<4x1xf32>
    %202 = arith.addf %198, %201 : vector<4x1xf32>
    %203 = math.rsqrt %202 : vector<4x1xf32>
    %204 = vector.broadcast %203 : vector<4x1xf32> to vector<4x256xf32>
    %205 = arith.mulf %200, %204 : vector<4x256xf32>
    %c0_178 = arith.constant 0 : index
    %c0_179 = arith.constant 0 : index
    %c0_180 = arith.constant 0 : index
    %206 = vector.load %arg1[%c0_178, %c0_179, %c0_180] : memref<1x4x256xf32, #tpu.memory_space<vmem>>, vector<1x4x256xf32>
    %207 = vector.shape_cast %206 : vector<1x4x256xf32> to vector<4x256xf32>
    %208 = arith.addf %207, %205 : vector<4x256xf32>
    %c0_181 = arith.constant 0 : index
    %c0_182 = arith.constant 0 : index
    %c0_183 = arith.constant 0 : index
    %209 = vector.load %arg4[%c0_181, %c0_182, %c0_183] : memref<1x4x256xf32, #tpu.memory_space<vmem>>, vector<1x4x256xf32>
    %210 = vector.shape_cast %209 : vector<1x4x256xf32> to vector<4x256xf32>
    %211 = vector.shape_cast %208 : vector<4x256xf32> to vector<1x4x256xf32>
    tpu.vector_store %arg4[%c0_181, %c0_182, %c0_183], %211 {strides = array<i32>} : memref<1x4x256xf32, #tpu.memory_space<vmem>>, vector<1x4x256xf32>,
    return
  }
  func.func @transform_0(%arg0: i32) -> (i32, i32, i32) {
    %c0_i32 = arith.constant 0 : i32
    %c0_i32_0 = arith.constant 0 : i32
    %c0_i32_1 = arith.constant 0 : i32
    return %arg0, %c0_i32, %c0_i32_0 : i32, i32, i32
  }
  func.func @transform_1(%arg0: i32) -> (i32, i32, i32) {
    %c0_i32 = arith.constant 0 : i32
    %c0_i32_0 = arith.constant 0 : i32
    %c0_i32_1 = arith.constant 0 : i32
    %c0_i32_2 = arith.constant 0 : i32
    return %c0_i32, %c0_i32_0, %c0_i32_1 : i32, i32, i32
  }
  func.func @transform_2(%arg0: i32) -> (i32, i32, i32) {
    %c0_i32 = arith.constant 0 : i32
    %c0_i32_0 = arith.constant 0 : i32
    %c0_i32_1 = arith.constant 0 : i32
    %c0_i32_2 = arith.constant 0 : i32
    return %c0_i32, %c0_i32_0, %c0_i32_1 : i32, i32, i32
  }
  func.func @transform_3(%arg0: i32) -> (i32, i32, i32) {
    %c0_i32 = arith.constant 0 : i32
    %c0_i32_0 = arith.constant 0 : i32
    %c0_i32_1 = arith.constant 0 : i32
    return %arg0, %c0_i32, %c0_i32_0 : i32, i32, i32
  }
}

</mosaic_0001>

<llo_original>
// kernel: resnet_block_forward.1
$region0: #{resnet_block_forward.1}
  #allocation0 [shape = 'u32[]', space=smem, size = 0x4, offset = 0x4, fixed_abs, tag = 'smem constant byte address 0x4 - core index']
  #allocation1 [shape = 'u32[144,128]{1,0:T(1,128)}', space=vmem, size = 0x12000, scoped, tag = 'internal scratch']
  #allocation2 [shape = 'f32[4,256]{1,0:T(4,128)}', space=vmem, size = 0x1000, scoped, tag = 'scratch operand']
  %s0 = inlined_call_operand.vmem [shape: f32[2,4,256], index: 0, kind: input, shape index: {}]
  %s1 = inlined_call_operand.vmem [shape: f32[9,4,4], index: 1, kind: input, shape index: {}]
  %s2 = inlined_call_operand.vmem [shape: f32[9,4,4], index: 2, kind: input, shape index: {}]
  %s3 = inlined_call_operand.vmem [shape: f32[2,4,256], index: 3, kind: output, shape index: {}]
  %s4 = sld [smem:[#allocation0]]
  $region45: #{resnet_block_forward.1} parent=0
    _
  %s6 = ssub.s32 1, %s4
  %s7 = scalar_select 0, %s6, %s4
  loop: start=0, step=1, limit=4
  $region2: #{resnet_block_forward.1} parent=0 // loop_pre_header
    _
  $region3: #{resnet_block_forward.1} parent=0 // loop_header
    %s9 = sphi 0, %s13
    %p10 = scmp.ge.s32.totalorder %s9, 4
    %s19 = sphi 0, %s21
    %s22 = sphi 0, %s19
    %s23 = sphi 0, %s22
    %s39 = sphi 0, %s23
    %s43 = sphi 0, %s43
    %s45 = sphi 0, %s43
    %s46 = sphi 0, %s45
    %s60 = sphi 0, %s46
    %s64 = sphi 0, %s64
    %s66 = sphi 0, %s64
    %s67 = sphi 0, %s66
    %s81 = sphi 0, %s67
    %s87 = sphi 0, %s89
    %s90 = sphi 0, %s87
    %s91 = sphi 0, %s90
    %s107 = sphi 0, %s91
  $region4: #{resnet_block_forward.1} parent=0 // loop_header_branch
    %12 = sbr.rel (%p10) target = $region8
  $region5: #{resnet_block_forward.1} parent=0 // loop_body
    %s14 = ssub.s32 %s9, 1
    %s15 = ssub.s32 %s9, 2
    %s16 = sadd.s32 %s9, 1
    %s17 = ssub.s32 %s9, %s16
    %p18 = scmp.eq.s32.totalorder %s17, 0
    %s20 = sadd.s32 %s19, 1
    %s21 = scalar_select %p18, %s19, %s20
    %p24 = pneg %p18
    %p25 = scmp.eq.s32.totalorder %s9, 1
    %p26 = por %p24, %p25
    %p27 = scmp.ne.s32.totalorder %s19, %s22
    %p28 = scmp.eq.s32.totalorder %s9, 0
    %p29 = por %p27, %p28
    %p30 = scmp.ne.s32.totalorder %s19, %s22
    %p31 = scmp.eq.s32.totalorder %s14, 1
    %p32 = por %p30, %p31
    %p33 = scmp.ne.s32.totalorder %s22, %s23
    %p34 = scmp.eq.s32.totalorder %s14, 0
    %p35 = por %p33, %p34
    %p36 = scmp.ne.s32.totalorder %s22, %s23
    %p37 = scmp.eq.s32.totalorder %s15, 1
    %p38 = por %p36, %p37
    %p40 = scmp.ne.s32.totalorder %s23, %s39
    %p41 = scmp.eq.s32.totalorder %s15, 0
    %p42 = por %p40, %p41
    %s44 = sadd.s32 %s43, 1
    %p47 = scmp.eq.s32.totalorder %s9, 1
    %p48 = scmp.ne.s32.totalorder %s43, %s45
    %p49 = scmp.eq.s32.totalorder %s9, 0
    %p50 = por %p48, %p49
    %p51 = scmp.ne.s32.totalorder %s43, %s45
    %p52 = scmp.eq.s32.totalorder %s14, 1
    %p53 = por %p51, %p52
    %p54 = scmp.ne.s32.totalorder %s45, %s46
    %p55 = scmp.eq.s32.totalorder %s14, 0
    %p56 = por %p54, %p55
    %p57 = scmp.ne.s32.totalorder %s45, %s46
    %p58 = scmp.eq.s32.totalorder %s15, 1
    %p59 = por %p57, %p58
    %p61 = scmp.ne.s32.totalorder %s46, %s60
    %p62 = scmp.eq.s32.totalorder %s15, 0
    %p63 = por %p61, %p62
    %s65 = sadd.s32 %s64, 1
    %p68 = scmp.eq.s32.totalorder %s9, 1
    %p69 = scmp.ne.s32.totalorder %s64, %s66
    %p70 = scmp.eq.s32.totalorder %s9, 0
    %p71 = por %p69, %p70
    %p72 = scmp.ne.s32.totalorder %s64, %s66
    %p73 = scmp.eq.s32.totalorder %s14, 1
    %p74 = por %p72, %p73
    %p75 = scmp.ne.s32.totalorder %s66, %s67
    %p76 = scmp.eq.s32.totalorder %s14, 0
    %p77 = por %p75, %p76
    %p78 = scmp.ne.s32.totalorder %s66, %s67
    %p79 = scmp.eq.s32.totalorder %s15, 1
    %p80 = por %p78, %p79
    %p82 = scmp.ne.s32.totalorder %s67, %s81
    %p83 = scmp.eq.s32.totalorder %s15, 0
    %p84 = por %p82, %p83
    %s85 = ssub.s32 %s9, %s16
    %p86 = scmp.eq.s32.totalorder %s85, 0
    %s88 = sadd.s32 %s87, 1
    %s89 = scalar_select %p86, %s87, %s88
    %p92 = pneg %p86
    %p93 = scmp.eq.s32.totalorder %s9, 1
    %p94 = por %p92, %p93
    %p95 = scmp.ne.s32.totalorder %s87, %s90
    %p96 = scmp.eq.s32.totalorder %s9, 0
    %p97 = por %p95, %p96
    %p98 = scmp.ne.s32.totalorder %s87, %s90
    %p99 = scmp.eq.s32.totalorder %s14, 1
    %p100 = por %p98, %p99
    %p101 = scmp.ne.s32.totalorder %s90, %s91
    %p102 = scmp.eq.s32.totalorder %s14, 0
    %p103 = por %p101, %p102
    %p104 = scmp.ne.s32.totalorder %s90, %s91
    %p105 = scmp.eq.s32.totalorder %s15, 1
    %p106 = por %p104, %p105
    %p108 = scmp.ne.s32.totalorder %s91, %s107
    %p109 = scmp.eq.s32.totalorder %s15, 0
    %p110 = por %p108, %p109
    %p111 = scmp.le.s32.totalorder 1, %s9
    %p112 = scmp.lt.s32.totalorder %s9, 3
    %p113 = pnand %p111, %p112
    %p114 = pneg %p113
    // Predicated region
    $region9: #{resnet_block_forward.1} parent=5 // pred_check
      _
    $region10: #{resnet_block_forward.1} parent=5 // pred_check_branch
      %116 = sbr.rel (%p113) target = $region12
    $region11: #{resnet_block_forward.1} parent=5 // pred_region
      %s117 = ssub.s32 %s9, 1
      // Predicated region
      $region13: #{resnet_block_forward.1} parent=11 // pred_check
        %p118 = pneg %p56
      $region14: #{resnet_block_forward.1} parent=11 // pred_check_branch
        %120 = sbr.rel (%p118) target = $region16
      $region15: #{resnet_block_forward.1} parent=11 // pred_region
        _
      $region16: #{resnet_block_forward.1} parent=11 // pred_fallthru
        _
      // Predicated region
      $region17: #{resnet_block_forward.1} parent=11 // pred_check
        %p121 = pneg %p77
      $region18: #{resnet_block_forward.1} parent=11 // pred_check_branch
        %123 = sbr.rel (%p121) target = $region20
      $region19: #{resnet_block_forward.1} parent=11 // pred_region
        _
      $region20: #{resnet_block_forward.1} parent=11 // pred_fallthru
        _
    $region12: #{resnet_block_forward.1} parent=5 // pred_fallthru
      _
    %p124 = scmp.lt.s32.totalorder %s9, 2
    // Predicated region
    $region21: #{resnet_block_forward.1} parent=5 // pred_check
      %p125 = pneg %p124
    $region22: #{resnet_block_forward.1} parent=5 // pred_check_branch
      %127 = sbr.rel (%p125) target = $region24
    $region23: #{resnet_block_forward.1} parent=5 // pred_region
      // Predicated region
      $region25: #{resnet_block_forward.1} parent=23 // pred_check
        %p128 = pneg %p29
      $region26: #{resnet_block_forward.1} parent=23 // pred_check_branch
        %130 = sbr.rel (%p128) target = $region28
      $region27: #{resnet_block_forward.1} parent=23 // pred_region
        %p131 = scmp.lt.s32.totalorder %s9, 1
        %s132 = scalar_select %p131, %s9, 1
        %s133 = smul.addr %s132, 2
        %s134 = smul.addr %s133, 4
        %s135 = scalar_lea.vmem %s0, %s134
      $region28: #{resnet_block_forward.1} parent=23 // pred_fallthru
        _
    $region24: #{resnet_block_forward.1} parent=5 // pred_fallthru
      _
    %p136 = scmp.le.s32.totalorder 1, %s9
    %p137 = scmp.lt.s32.totalorder %s9, 3
    %p138 = pnand %p136, %p137
    %p139 = pneg %p138
    // Predicated region
    $region29: #{resnet_block_forward.1} parent=5 // pred_check
      _
    $region30: #{resnet_block_forward.1} parent=5 // pred_check_branch
      %141 = sbr.rel (%p138) target = $region32
    $region31: #{resnet_block_forward.1} parent=5 // pred_region
      %s142 = ssub.s32 %s9, 1
      %p143 = scmp.lt.s32.totalorder %s14, 1
      %s144 = scalar_select %p143, %s14, 1
      %s145 = smul.addr %s144, 2
      %s146 = smul.addr %s145, 4
      %s147 = scalar_lea.vmem %s0, %s146
      %p148 = pneg %p35
      %p149 = pneg %p32
      %p150 = pneg %p56
      %p151 = pneg %p53
      %p152 = pneg %p77
      %p153 = pneg %p74
      %p154 = pneg %p103
      %p155 = pneg %p100
      %p156 = scmp.lt.s32.totalorder %s14, 1
      %s157 = scalar_select %p156, %s14, 1
      %s158 = smul.addr %s157, 2
      %s159 = smul.addr %s158, 4
      %s160 = scalar_lea.vmem %s3, %s159
      %p161 = scmp.lt.s32.totalorder %s14, 1
      %s162 = scalar_select %p161, %s14, 1
      %s163 = smul.addr %s162, 2
      %s164 = smul.addr %s163, 4
      %s165 = scalar_lea.vmem %s0, %s164
      %p166 = scmp.lt.s32.totalorder %s14, 1
      %s167 = scalar_select %p166, %s14, 1
      %s168 = smul.addr %s167, 2
      %s169 = smul.addr %s168, 4
      %s170 = scalar_lea.vmem %s3, %s169
      %v171 = vlaneseq
      %v172 = vand.u32 %v171, 127
      %v173 = vadd.s32 %v172, 128
      %vm174 = vcmp.lt.s32.totalorder %v172, 16
      %vm175 = vcmp.lt.s32.totalorder %v173, 16
      %vm176 = vcmp.ge.s32.totalorder %v172, 240
      %vm177 = vcmp.ge.s32.totalorder %v173, 240
      %v178 = vcvt.s32.f32 %v172
      %v179 = vcvt.s32.f32 %v173
      %v180 = vrcp.pop 16.0
      %v181 = vmul.f32 %v178, %v180
      %v182 = vmul.f32 %v179, %v180
      %v183 = vfloor.f32 %v181
      %v184 = vfloor.f32 %v182
      %v185 = vmul.f32 %v183, 16.0
      %v186 = vmul.f32 %v184, 16.0
      %v187 = vsub.f32 %v178, %v185
      %v188 = vsub.f32 %v179, %v186
      %vm189 = vcmp.lt.f32.partialorder %v187, 0.5
      %vm190 = vcmp.lt.f32.partialorder %v188, 0.5
      %vm191 = vcmp.gt.f32.partialorder %v187, 14.5
      %vm192 = vcmp.gt.f32.partialorder %v188, 14.5
      %v193 = vld [vmem:[%s165] sm:$0xff]
      %v195 = vcombine.high %v193, %v193
      %197 = vrot.lane.b32.xlu0 %v193, 16
      %v198 = vpop.permute.xlu0 %197
      %199 = vrot.lane.b32.xlu0 %v195, 16
      %v200 = vpop.permute.xlu0 %199
      %v201 = vsel %vm174, %v198, %v200
      %v202 = vsel %vm174, %v200, %v198
      %203 = vrot.lane.b32.xlu0 %v193, 112
      %v204 = vpop.permute.xlu0 %203
      %205 = vrot.lane.b32.xlu0 %v195, 112
      %v206 = vpop.permute.xlu0 %205
      %vm207 = vcmp.lt.s32.totalorder %v172, 112
      %v208 = vsel %vm207, %v204, %v206
      %v209 = vsel %vm207, %v206, %v204
      %v210 = vsel %vm174, %v208, %v202
      %v211 = vsel %vm175, %v209, %v201
      %v212 = vsel %vm176, %v202, %v208
      %v213 = vsel %vm177, %v201, %v209
      %214 = vst [vmem:[#allocation2] sm:$0xff] 0.0
      %215 = vrot.lane.b32.xlu0 %v210, 1
      %v216 = vpop.permute.xlu0 %215
      %217 = vrot.lane.b32.xlu0 %v211, 1
      %v218 = vpop.permute.xlu0 %217
      %vm219 = vcmp.lt.s32.totalorder %v172, 1
      %v220 = vsel %vm219, %v216, %v218
      %v221 = vsel %vm219, %v218, %v216
      %222 = vrot.lane.b32.xlu0 %v210, 127
      %v223 = vpop.permute.xlu0 %222
      %224 = vrot.lane.b32.xlu0 %v211, 127
      %v225 = vpop.permute.xlu0 %224
      %vm226 = vcmp.lt.s32.totalorder %v172, 127
      %v227 = vsel %vm226, %v223, %v225
      %v228 = vsel %vm226, %v225, %v223
      %v229 = vsel %vm189, %v227, %v221
      %v230 = vsel %vm190, %v228, %v220
      %v231 = vsel %vm191, %v221, %v227
      %v232 = vsel %vm192, %v220, %v228
      %v233 = vld [vmem:[#allocation2] sm:$0xff]
      %v234 = vld [vmem:[%s1] sm:$0xf]
      %vm235 = vcmask 31744
      %v237 = vsel %vm235, %v234, 0
      %vm239 = vcmask 1043456
      %v241 = vsel %vm239, %v229, 0
      %v244 = vsel %vm239, %v230, 0
      %246 = vmatprep.subr.mxu0 %v244
      %247 = vmatpush1.msra.mxu0 %v241
      %248 = vmatprep.subr.mxu0 0.0
      %249 = vmatpush1.msra.mxu0 0.0
      %250 = vmatprep.subr.mxu0 0.0
      %251 = vmatpush1.msra.mxu0 0.0
      %252 = vmatprep.subr.mxu0 0.0
      %253 = vmatpush1.msra.mxu0 0.0
      %254 = vmatprep.subr.mxu0 0.0
      %255 = vmatpush1.msra.mxu0 0.0
      %256 = vmatprep.subr.mxu0 0.0
      %257 = vmatpush1.msra.mxu0 0.0
      %258 = vmatprep.subr.mxu0 0.0
      %259 = vmatpush1.msra.mxu0 0.0
      %260 = vmatprep.subr.mxu0 0.0
      %261 = vmatpush1.msra.mxu0 0.0
      %262 = vmatprep.subr.mxu0 0.0
      %263 = vmatpush1.msra.mxu0 0.0
      %264 = vmatprep.subr.mxu0 0.0
      %265 = vmatpush1.msra.mxu0 0.0
      %266 = vmatprep.subr.mxu0 0.0
      %267 = vmatpush1.msra.mxu0 0.0
      %268 = vmatprep.subr.mxu0 0.0
      %269 = vmatpush1.msra.mxu0 0.0
      %270 = vmatprep.subr.mxu0 0.0
      %271 = vmatpush1.msra.mxu0 0.0
      %272 = vmatprep.subr.mxu0 0.0
      %273 = vmatpush1.msra.mxu0 0.0
      %274 = vmatprep.subr.mxu0 0.0
      %275 = vmatpush1.msra.mxu0 0.0
      %276 = vmatprep.subr.mxu0 0.0
      %277 = vmatpush1.msra.mxu0 0.0
      %278 = vmatprep.subr.mxu0 0.0
      %279 = vmatpush1.msra.mxu0 0.0
      %280 = vmatprep.subr.mxu0 0.0
      %281 = vmatpush1.msra.mxu0 0.0
      %282 = vmatprep.subr.mxu0 0.0
      %283 = vmatpush1.msra.mxu0 0.0
      %284 = vmatprep.subr.mxu0 0.0
      %285 = vmatpush1.msra.mxu0 0.0
      %286 = vmatprep.subr.mxu0 0.0
      %287 = vmatpush1.msra.mxu0 0.0
      %288 = vmatprep.subr.mxu0 0.0
      %289 = vmatpush1.msra.mxu0 0.0
      %290 = vmatprep.subr.mxu0 0.0
      %291 = vmatpush1.msra.mxu0 0.0
      %292 = vmatprep.subr.mxu0 0.0
      %293 = vmatpush1.msra.mxu0 0.0
      %294 = vmatprep.subr.mxu0 0.0
      %295 = vmatpush1.msra.mxu0 0.0
      %296 = vmatprep.subr.mxu0 0.0
      %297 = vmatpush1.msra.mxu0 0.0
      %298 = vmatprep.subr.mxu0 0.0
      %299 = vmatpush1.msra.mxu0 0.0
      %300 = vmatprep.subr.mxu0 0.0
      %301 = vmatpush1.msra.mxu0 0.0
      %302 = vmatprep.subr.mxu0 0.0
      %303 = vmatpush1.msra.mxu0 0.0
      %304 = vmatprep.subr.mxu0 0.0
      %305 = vmatpush1.msra.mxu0 0.0
      %306 = vmatprep.subr.mxu0 0.0
      %307 = vmatpush1.msra.mxu0 0.0
      %308 = vmatprep.subr.mxu0 0.0
      %309 = vmatpush1.msra.mxu0 0.0
      %310 = vmatprep.mubr.f32.mxu0 0.0
      %311 = vmatmul.mubr.f32.gmra.mrb[0].mxu0 %v237
      %v312 = vpop.f32.mrb[0].mxu0
      %v313 = vadd.f32 0.0, %v312
      %v314 = vpop.f32.mrb[0].mxu0
      %v315 = vadd.f32 0.0, %v314
      %316 = vdwg.mxu0
      %v319 = vcombine.low %v313, %v315
      %v321 = vadd.f32 %v233, %v319
      %322 = vst [vmem:[#allocation2] sm:$0xff] %v321
      %v323 = vld [vmem:[#allocation2] sm:$0xff]
      %s324 = scalar_lea.vmem %s1, 4
      %v325 = vld [vmem:[%s324] sm:$0xf]
      %v327 = vsel %vm235, %v325, 0
      %v330 = vsel %vm239, %v210, 0
      %v333 = vsel %vm239, %v211, 0
      %335 = vmatprep.subr.mxu0 %v333
      %336 = vmatpush1.msra.mxu0 %v330
      %337 = vmatprep.subr.mxu0 0.0
      %338 = vmatpush1.msra.mxu0 0.0
      %339 = vmatprep.subr.mxu0 0.0
      %340 = vmatpush1.msra.mxu0 0.0
      %341 = vmatprep.subr.mxu0 0.0
      %342 = vmatpush1.msra.mxu0 0.0
      %343 = vmatprep.subr.mxu0 0.0
      %344 = vmatpush1.msra.mxu0 0.0
      %345 = vmatprep.subr.mxu0 0.0
      %346 = vmatpush1.msra.mxu0 0.0
      %347 = vmatprep.subr.mxu0 0.0
      %348 = vmatpush1.msra.mxu0 0.0
      %349 = vmatprep.subr.mxu0 0.0
      %350 = vmatpush1.msra.mxu0 0.0
      %351 = vmatprep.subr.mxu0 0.0
      %352 = vmatpush1.msra.mxu0 0.0
      %353 = vmatprep.subr.mxu0 0.0
      %354 = vmatpush1.msra.mxu0 0.0
      %355 = vmatprep.subr.mxu0 0.0
      %356 = vmatpush1.msra.mxu0 0.0
      %357 = vmatprep.subr.mxu0 0.0
      %358 = vmatpush1.msra.mxu0 0.0
      %359 = vmatprep.subr.mxu0 0.0
      %360 = vmatpush1.msra.mxu0 0.0
      %361 = vmatprep.subr.mxu0 0.0
      %362 = vmatpush1.msra.mxu0 0.0
      %363 = vmatprep.subr.mxu0 0.0
      %364 = vmatpush1.msra.mxu0 0.0
      %365 = vmatprep.subr.mxu0 0.0
      %366 = vmatpush1.msra.mxu0 0.0
      %367 = vmatprep.subr.mxu0 0.0
      %368 = vmatpush1.msra.mxu0 0.0
      %369 = vmatprep.subr.mxu0 0.0
      %370 = vmatpush1.msra.mxu0 0.0
      %371 = vmatprep.subr.mxu0 0.0
      %372 = vmatpush1.msra.mxu0 0.0
      %373 = vmatprep.subr.mxu0 0.0
      %374 = vmatpush1.msra.mxu0 0.0
      %375 = vmatprep.subr.mxu0 0.0
      %376 = vmatpush1.msra.mxu0 0.0
      %377 = vmatprep.subr.mxu0 0.0
      %378 = vmatpush1.msra.mxu0 0.0
      %379 = vmatprep.subr.mxu0 0.0
      %380 = vmatpush1.msra.mxu0 0.0
      %381 = vmatprep.subr.mxu0 0.0
      %382 = vmatpush1.msra.mxu0 0.0
      %383 = vmatprep.subr.mxu0 0.0
      %384 = vmatpush1.msra.mxu0 0.0
      %385 = vmatprep.subr.mxu0 0.0
      %386 = vmatpush1.msra.mxu0 0.0
      %387 = vmatprep.subr.mxu0 0.0
      %388 = vmatpush1.msra.mxu0 0.0
      %389 = vmatprep.subr.mxu0 0.0
      %390 = vmatpush1.msra.mxu0 0.0
      %391 = vmatprep.subr.mxu0 0.0
      %392 = vmatpush1.msra.mxu0 0.0
      %393 = vmatprep.subr.mxu0 0.0
      %394 = vmatpush1.msra.mxu0 0.0
      %395 = vmatprep.subr.mxu0 0.0
      %396 = vmatpush1.msra.mxu0 0.0
      %397 = vmatprep.subr.mxu0 0.0
      %398 = vmatpush1.msra.mxu0 0.0
      %399 = vmatprep.mubr.f32.mxu0 0.0
      %400 = vmatmul.mubr.f32.gmra.mrb[0].mxu0 %v327
      %v401 = vpop.f32.mrb[0].mxu0
      %v402 = vadd.f32 0.0, %v401
      %v403 = vpop.f32.mrb[0].mxu0
      %v404 = vadd.f32 0.0, %v403
      %405 = vdwg.mxu0
      %v408 = vcombine.low %v402, %v404
      %v410 = vadd.f32 %v323, %v408
      %411 = vst [vmem:[#allocation2] sm:$0xff] %v410
      %v412 = vld [vmem:[#allocation2] sm:$0xff]
      %s413 = scalar_lea.vmem %s1, 8
      %v414 = vld [vmem:[%s413] sm:$0xf]
      %v416 = vsel %vm235, %v414, 0
      %v419 = vsel %vm239, %v231, 0
      %v422 = vsel %vm239, %v232, 0
      %424 = vmatprep.subr.mxu0 %v422
      %425 = vmatpush1.msra.mxu0 %v419
      %426 = vmatprep.subr.mxu0 0.0
      %427 = vmatpush1.msra.mxu0 0.0
      %428 = vmatprep.subr.mxu0 0.0
      %429 = vmatpush1.msra.mxu0 0.0
      %430 = vmatprep.subr.mxu0 0.0
      %431 = vmatpush1.msra.mxu0 0.0
      %432 = vmatprep.subr.mxu0 0.0
      %433 = vmatpush1.msra.mxu0 0.0
      %434 = vmatprep.subr.mxu0 0.0
      %435 = vmatpush1.msra.mxu0 0.0
      %436 = vmatprep.subr.mxu0 0.0
      %437 = vmatpush1.msra.mxu0 0.0
      %438 = vmatprep.subr.mxu0 0.0
      %439 = vmatpush1.msra.mxu0 0.0
      %440 = vmatprep.subr.mxu0 0.0
      %441 = vmatpush1.msra.mxu0 0.0
      %442 = vmatprep.subr.mxu0 0.0
      %443 = vmatpush1.msra.mxu0 0.0
      %444 = vmatprep.subr.mxu0 0.0
      %445 = vmatpush1.msra.mxu0 0.0
      %446 = vmatprep.subr.mxu0 0.0
      %447 = vmatpush1.msra.mxu0 0.0
      %448 = vmatprep.subr.mxu0 0.0
      %449 = vmatpush1.msra.mxu0 0.0
      %450 = vmatprep.subr.mxu0 0.0
      %451 = vmatpush1.msra.mxu0 0.0
      %452 = vmatprep.subr.mxu0 0.0
      %453 = vmatpush1.msra.mxu0 0.0
      %454 = vmatprep.subr.mxu0 0.0
      %455 = vmatpush1.msra.mxu0 0.0
      %456 = vmatprep.subr.mxu0 0.0
      %457 = vmatpush1.msra.mxu0 0.0
      %458 = vmatprep.subr.mxu0 0.0
      %459 = vmatpush1.msra.mxu0 0.0
      %460 = vmatprep.subr.mxu0 0.0
      %461 = vmatpush1.msra.mxu0 0.0
      %462 = vmatprep.subr.mxu0 0.0
      %463 = vmatpush1.msra.mxu0 0.0
      %464 = vmatprep.subr.mxu0 0.0
      %465 = vmatpush1.msra.mxu0 0.0
      %466 = vmatprep.subr.mxu0 0.0
      %467 = vmatpush1.msra.mxu0 0.0
      %468 = vmatprep.subr.mxu0 0.0
      %469 = vmatpush1.msra.mxu0 0.0
      %470 = vmatprep.subr.mxu0 0.0
      %471 = vmatpush1.msra.mxu0 0.0
      %472 = vmatprep.subr.mxu0 0.0
      %473 = vmatpush1.msra.mxu0 0.0
      %474 = vmatprep.subr.mxu0 0.0
      %475 = vmatpush1.msra.mxu0 0.0
      %476 = vmatprep.subr.mxu0 0.0
      %477 = vmatpush1.msra.mxu0 0.0
      %478 = vmatprep.subr.mxu0 0.0
      %479 = vmatpush1.msra.mxu0 0.0
      %480 = vmatprep.subr.mxu0 0.0
      %481 = vmatpush1.msra.mxu0 0.0
      %482 = vmatprep.subr.mxu0 0.0
      %483 = vmatpush1.msra.mxu0 0.0
      %484 = vmatprep.subr.mxu0 0.0
      %485 = vmatpush1.msra.mxu0 0.0
      %486 = vmatprep.subr.mxu0 0.0
      %487 = vmatpush1.msra.mxu0 0.0
      %488 = vmatprep.mubr.f32.mxu0 0.0
      %489 = vmatmul.mubr.f32.gmra.mrb[0].mxu0 %v416
      %v490 = vpop.f32.mrb[0].mxu0
      %v491 = vadd.f32 0.0, %v490
      %v492 = vpop.f32.mrb[0].mxu0
      %v493 = vadd.f32 0.0, %v492
      %494 = vdwg.mxu0
      %v497 = vcombine.low %v491, %v493
      %v499 = vadd.f32 %v412, %v497
      %500 = vst [vmem:[#allocation2] sm:$0xff] %v499
      %501 = vrot.lane.b32.xlu0 %v193, 1
      %v502 = vpop.permute.xlu0 %501
      %503 = vrot.lane.b32.xlu0 %v195, 1
      %v504 = vpop.permute.xlu0 %503
      %v505 = vsel %vm219, %v502, %v504
      %v506 = vsel %vm219, %v504, %v502
      %507 = vrot.lane.b32.xlu0 %v193, 127
      %v508 = vpop.permute.xlu0 %507
      %509 = vrot.lane.b32.xlu0 %v195, 127
      %v510 = vpop.permute.xlu0 %509
      %v511 = vsel %vm226, %v508, %v510
      %v512 = vsel %vm226, %v510, %v508
      %v513 = vsel %vm189, %v511, %v506
      %v514 = vsel %vm190, %v512, %v505
      %v515 = vsel %vm191, %v506, %v511
      %v516 = vsel %vm192, %v505, %v512
      %v517 = vld [vmem:[#allocation2] sm:$0xff]
      %s518 = scalar_lea.vmem %s1, 12
      %v519 = vld [vmem:[%s518] sm:$0xf]
      %v521 = vsel %vm235, %v519, 0
      %v524 = vsel %vm239, %v513, 0
      %v527 = vsel %vm239, %v514, 0
      %529 = vmatprep.subr.mxu0 %v527
      %530 = vmatpush1.msra.mxu0 %v524
      %531 = vmatprep.subr.mxu0 0.0
      %532 = vmatpush1.msra.mxu0 0.0
      %533 = vmatprep.subr.mxu0 0.0
      %534 = vmatpush1.msra.mxu0 0.0
      %535 = vmatprep.subr.mxu0 0.0
      %536 = vmatpush1.msra.mxu0 0.0
      %537 = vmatprep.subr.mxu0 0.0
      %538 = vmatpush1.msra.mxu0 0.0
      %539 = vmatprep.subr.mxu0 0.0
      %540 = vmatpush1.msra.mxu0 0.0
      %541 = vmatprep.subr.mxu0 0.0
      %542 = vmatpush1.msra.mxu0 0.0
      %543 = vmatprep.subr.mxu0 0.0
      %544 = vmatpush1.msra.mxu0 0.0
      %545 = vmatprep.subr.mxu0 0.0
      %546 = vmatpush1.msra.mxu0 0.0
      %547 = vmatprep.subr.mxu0 0.0
      %548 = vmatpush1.msra.mxu0 0.0
      %549 = vmatprep.subr.mxu0 0.0
      %550 = vmatpush1.msra.mxu0 0.0
      %551 = vmatprep.subr.mxu0 0.0
      %552 = vmatpush1.msra.mxu0 0.0
      %553 = vmatprep.subr.mxu0 0.0
      %554 = vmatpush1.msra.mxu0 0.0
      %555 = vmatprep.subr.mxu0 0.0
      %556 = vmatpush1.msra.mxu0 0.0
      %557 = vmatprep.subr.mxu0 0.0
      %558 = vmatpush1.msra.mxu0 0.0
      %559 = vmatprep.subr.mxu0 0.0
      %560 = vmatpush1.msra.mxu0 0.0
      %561 = vmatprep.subr.mxu0 0.0
      %562 = vmatpush1.msra.mxu0 0.0
      %563 = vmatprep.subr.mxu0 0.0
      %564 = vmatpush1.msra.mxu0 0.0
      %565 = vmatprep.subr.mxu0 0.0
      %566 = vmatpush1.msra.mxu0 0.0
      %567 = vmatprep.subr.mxu0 0.0
      %568 = vmatpush1.msra.mxu0 0.0
      %569 = vmatprep.subr.mxu0 0.0
      %570 = vmatpush1.msra.mxu0 0.0
      %571 = vmatprep.subr.mxu0 0.0
      %572 = vmatpush1.msra.mxu0 0.0
      %573 = vmatprep.subr.mxu0 0.0
      %574 = vmatpush1.msra.mxu0 0.0
      %575 = vmatprep.subr.mxu0 0.0
      %576 = vmatpush1.msra.mxu0 0.0
      %577 = vmatprep.subr.mxu0 0.0
      %578 = vmatpush1.msra.mxu0 0.0
      %579 = vmatprep.subr.mxu0 0.0
      %580 = vmatpush1.msra.mxu0 0.0
      %581 = vmatprep.subr.mxu0 0.0
      %582 = vmatpush1.msra.mxu0 0.0
      %583 = vmatprep.subr.mxu0 0.0
      %584 = vmatpush1.msra.mxu0 0.0
      %585 = vmatprep.subr.mxu0 0.0
      %586 = vmatpush1.msra.mxu0 0.0
      %587 = vmatprep.subr.mxu0 0.0
      %588 = vmatpush1.msra.mxu0 0.0
      %589 = vmatprep.subr.mxu0 0.0
      %590 = vmatpush1.msra.mxu0 0.0
      %591 = vmatprep.subr.mxu0 0.0
      %592 = vmatpush1.msra.mxu0 0.0
      %593 = vmatprep.mubr.f32.mxu0 0.0
      %594 = vmatmul.mubr.f32.gmra.mrb[0].mxu0 %v521
      %v595 = vpop.f32.mrb[0].mxu0
      %v596 = vadd.f32 0.0, %v595
      %v597 = vpop.f32.mrb[0].mxu0
      %v598 = vadd.f32 0.0, %v597
      %599 = vdwg.mxu0
      %v602 = vcombine.low %v596, %v598
      %v604 = vadd.f32 %v517, %v602
      %605 = vst [vmem:[#allocation2] sm:$0xff] %v604
      %v606 = vld [vmem:[#allocation2] sm:$0xff]
      %s607 = scalar_lea.vmem %s1, 16
      %v608 = vld [vmem:[%s607] sm:$0xf]
      %v610 = vsel %vm235, %v608, 0
      %v612 = vsel %vm239, %v193, 0
      %v614 = vsel %vm239, %v195, 0
      %616 = vmatprep.subr.mxu0 %v614
      %617 = vmatpush1.msra.mxu0 %v612
      %618 = vmatprep.subr.mxu0 0.0
      %619 = vmatpush1.msra.mxu0 0.0
      %620 = vmatprep.subr.mxu0 0.0
      %621 = vmatpush1.msra.mxu0 0.0
      %622 = vmatprep.subr.mxu0 0.0
      %623 = vmatpush1.msra.mxu0 0.0
      %624 = vmatprep.subr.mxu0 0.0
      %625 = vmatpush1.msra.mxu0 0.0
      %626 = vmatprep.subr.mxu0 0.0
      %627 = vmatpush1.msra.mxu0 0.0
      %628 = vmatprep.subr.mxu0 0.0
      %629 = vmatpush1.msra.mxu0 0.0
      %630 = vmatprep.subr.mxu0 0.0
      %631 = vmatpush1.msra.mxu0 0.0
      %632 = vmatprep.subr.mxu0 0.0
      %633 = vmatpush1.msra.mxu0 0.0
      %634 = vmatprep.subr.mxu0 0.0
      %635 = vmatpush1.msra.mxu0 0.0
      %636 = vmatprep.subr.mxu0 0.0
      %637 = vmatpush1.msra.mxu0 0.0
      %638 = vmatprep.subr.mxu0 0.0
      %639 = vmatpush1.msra.mxu0 0.0
      %640 = vmatprep.subr.mxu0 0.0
      %641 = vmatpush1.msra.mxu0 0.0
      %642 = vmatprep.subr.mxu0 0.0
      %643 = vmatpush1.msra.mxu0 0.0
      %644 = vmatprep.subr.mxu0 0.0
      %645 = vmatpush1.msra.mxu0 0.0
      %646 = vmatprep.subr.mxu0 0.0
      %647 = vmatpush1.msra.mxu0 0.0
      %648 = vmatprep.subr.mxu0 0.0
      %649 = vmatpush1.msra.mxu0 0.0
      %650 = vmatprep.subr.mxu0 0.0
      %651 = vmatpush1.msra.mxu0 0.0
      %652 = vmatprep.subr.mxu0 0.0
      %653 = vmatpush1.msra.mxu0 0.0
      %654 = vmatprep.subr.mxu0 0.0
      %655 = vmatpush1.msra.mxu0 0.0
      %656 = vmatprep.subr.mxu0 0.0
      %657 = vmatpush1.msra.mxu0 0.0
      %658 = vmatprep.subr.mxu0 0.0
      %659 = vmatpush1.msra.mxu0 0.0
      %660 = vmatprep.subr.mxu0 0.0
      %661 = vmatpush1.msra.mxu0 0.0
      %662 = vmatprep.subr.mxu0 0.0
      %663 = vmatpush1.msra.mxu0 0.0
      %664 = vmatprep.subr.mxu0 0.0
      %665 = vmatpush1.msra.mxu0 0.0
      %666 = vmatprep.subr.mxu0 0.0
      %667 = vmatpush1.msra.mxu0 0.0
      %668 = vmatprep.subr.mxu0 0.0
      %669 = vmatpush1.msra.mxu0 0.0
      %670 = vmatprep.subr.mxu0 0.0
      %671 = vmatpush1.msra.mxu0 0.0
      %672 = vmatprep.subr.mxu0 0.0
      %673 = vmatpush1.msra.mxu0 0.0
      %674 = vmatprep.subr.mxu0 0.0
      %675 = vmatpush1.msra.mxu0 0.0
      %676 = vmatprep.subr.mxu0 0.0
      %677 = vmatpush1.msra.mxu0 0.0
      %678 = vmatprep.subr.mxu0 0.0
      %679 = vmatpush1.msra.mxu0 0.0
      %680 = vmatprep.mubr.f32.mxu0 0.0
      %681 = vmatmul.mubr.f32.gmra.mrb[0].mxu0 %v610
      %v682 = vpop.f32.mrb[0].mxu0
      %v683 = vadd.f32 0.0, %v682
      %v684 = vpop.f32.mrb[0].mxu0
      %v685 = vadd.f32 0.0, %v684
      %686 = vdwg.mxu0
      %v689 = vcombine.low %v683, %v685
      %v691 = vadd.f32 %v606, %v689
      %692 = vst [vmem:[#allocation2] sm:$0xff] %v691
      %v693 = vld [vmem:[#allocation2] sm:$0xff]
      %s694 = scalar_lea.vmem %s1, 20
      %v695 = vld [vmem:[%s694] sm:$0xf]
      %v697 = vsel %vm235, %v695, 0
      %v700 = vsel %vm239, %v515, 0
      %v703 = vsel %vm239, %v516, 0
      %705 = vmatprep.subr.mxu0 %v703
      %706 = vmatpush1.msra.mxu0 %v700
      %707 = vmatprep.subr.mxu0 0.0
      %708 = vmatpush1.msra.mxu0 0.0
      %709 = vmatprep.subr.mxu0 0.0
      %710 = vmatpush1.msra.mxu0 0.0
      %711 = vmatprep.subr.mxu0 0.0
      %712 = vmatpush1.msra.mxu0 0.0
      %713 = vmatprep.subr.mxu0 0.0
      %714 = vmatpush1.msra.mxu0 0.0
      %715 = vmatprep.subr.mxu0 0.0
      %716 = vmatpush1.msra.mxu0 0.0
      %717 = vmatprep.subr.mxu0 0.0
      %718 = vmatpush1.msra.mxu0 0.0
      %719 = vmatprep.subr.mxu0 0.0
      %720 = vmatpush1.msra.mxu0 0.0
      %721 = vmatprep.subr.mxu0 0.0
      %722 = vmatpush1.msra.mxu0 0.0
      %723 = vmatprep.subr.mxu0 0.0
      %724 = vmatpush1.msra.mxu0 0.0
      %725 = vmatprep.subr.mxu0 0.0
      %726 = vmatpush1.msra.mxu0 0.0
      %727 = vmatprep.subr.mxu0 0.0
      %728 = vmatpush1.msra.mxu0 0.0
      %729 = vmatprep.subr.mxu0 0.0
      %730 = vmatpush1.msra.mxu0 0.0
      %731 = vmatprep.subr.mxu0 0.0
      %732 = vmatpush1.msra.mxu0 0.0
      %733 = vmatprep.subr.mxu0 0.0
      %734 = vmatpush1.msra.mxu0 0.0
      %735 = vmatprep.subr.mxu0 0.0
      %736 = vmatpush1.msra.mxu0 0.0
      %737 = vmatprep.subr.mxu0 0.0
      %738 = vmatpush1.msra.mxu0 0.0
      %739 = vmatprep.subr.mxu0 0.0
      %740 = vmatpush1.msra.mxu0 0.0
      %741 = vmatprep.subr.mxu0 0.0
      %742 = vmatpush1.msra.mxu0 0.0
      %743 = vmatprep.subr.mxu0 0.0
      %744 = vmatpush1.msra.mxu0 0.0
      %745 = vmatprep.subr.mxu0 0.0
      %746 = vmatpush1.msra.mxu0 0.0
      %747 = vmatprep.subr.mxu0 0.0
      %748 = vmatpush1.msra.mxu0 0.0
      %749 = vmatprep.subr.mxu0 0.0
      %750 = vmatpush1.msra.mxu0 0.0
      %751 = vmatprep.subr.mxu0 0.0
      %752 = vmatpush1.msra.mxu0 0.0
      %753 = vmatprep.subr.mxu0 0.0
      %754 = vmatpush1.msra.mxu0 0.0
      %755 = vmatprep.subr.mxu0 0.0
      %756 = vmatpush1.msra.mxu0 0.0
      %757 = vmatprep.subr.mxu0 0.0
      %758 = vmatpush1.msra.mxu0 0.0
      %759 = vmatprep.subr.mxu0 0.0
      %760 = vmatpush1.msra.mxu0 0.0
      %761 = vmatprep.subr.mxu0 0.0
      %762 = vmatpush1.msra.mxu0 0.0
      %763 = vmatprep.subr.mxu0 0.0
      %764 = vmatpush1.msra.mxu0 0.0
      %765 = vmatprep.subr.mxu0 0.0
      %766 = vmatpush1.msra.mxu0 0.0
      %767 = vmatprep.subr.mxu0 0.0
      %768 = vmatpush1.msra.mxu0 0.0
      %769 = vmatprep.mubr.f32.mxu0 0.0
      %770 = vmatmul.mubr.f32.gmra.mrb[0].mxu0 %v697
      %v771 = vpop.f32.mrb[0].mxu0
      %v772 = vadd.f32 0.0, %v771
      %v773 = vpop.f32.mrb[0].mxu0
      %v774 = vadd.f32 0.0, %v773
      %775 = vdwg.mxu0
      %v778 = vcombine.low %v772, %v774
      %v780 = vadd.f32 %v693, %v778
      %781 = vst [vmem:[#allocation2] sm:$0xff] %v780
      %782 = vrot.lane.b32.xlu0 %v212, 1
      %v783 = vpop.permute.xlu0 %782
      %784 = vrot.lane.b32.xlu0 %v213, 1
      %v785 = vpop.permute.xlu0 %784
      %v786 = vsel %vm219, %v783, %v785
      %v787 = vsel %vm219, %v785, %v783
      %788 = vrot.lane.b32.xlu0 %v212, 127
      %v789 = vpop.permute.xlu0 %788
      %790 = vrot.lane.b32.xlu0 %v213, 127
      %v791 = vpop.permute.xlu0 %790
      %v792 = vsel %vm226, %v789, %v791
      %v793 = vsel %vm226, %v791, %v789
      %v794 = vsel %vm189, %v792, %v787
      %v795 = vsel %vm190, %v793, %v786
      %v796 = vsel %vm191, %v787, %v792
      %v797 = vsel %vm192, %v786, %v793
      %v798 = vld [vmem:[#allocation2] sm:$0xff]
      %s799 = scalar_lea.vmem %s1, 24
      %v800 = vld [vmem:[%s799] sm:$0xf]
      %v802 = vsel %vm235, %v800, 0
      %v805 = vsel %vm239, %v794, 0
      %v808 = vsel %vm239, %v795, 0
      %810 = vmatprep.subr.mxu0 %v808
      %811 = vmatpush1.msra.mxu0 %v805
      %812 = vmatprep.subr.mxu0 0.0
      %813 = vmatpush1.msra.mxu0 0.0
      %814 = vmatprep.subr.mxu0 0.0
      %815 = vmatpush1.msra.mxu0 0.0
      %816 = vmatprep.subr.mxu0 0.0
      %817 = vmatpush1.msra.mxu0 0.0
      %818 = vmatprep.subr.mxu0 0.0
      %819 = vmatpush1.msra.mxu0 0.0
      %820 = vmatprep.subr.mxu0 0.0
      %821 = vmatpush1.msra.mxu0 0.0
      %822 = vmatprep.subr.mxu0 0.0
      %823 = vmatpush1.msra.mxu0 0.0
      %824 = vmatprep.subr.mxu0 0.0
      %825 = vmatpush1.msra.mxu0 0.0
      %826 = vmatprep.subr.mxu0 0.0
      %827 = vmatpush1.msra.mxu0 0.0
      %828 = vmatprep.subr.mxu0 0.0
      %829 = vmatpush1.msra.mxu0 0.0
      %830 = vmatprep.subr.mxu0 0.0
      %831 = vmatpush1.msra.mxu0 0.0
      %832 = vmatprep.subr.mxu0 0.0
      %833 = vmatpush1.msra.mxu0 0.0
      %834 = vmatprep.subr.mxu0 0.0
      %835 = vmatpush1.msra.mxu0 0.0
      %836 = vmatprep.subr.mxu0 0.0
      %837 = vmatpush1.msra.mxu0 0.0
      %838 = vmatprep.subr.mxu0 0.0
      %839 = vmatpush1.msra.mxu0 0.0
      %840 = vmatprep.subr.mxu0 0.0
      %841 = vmatpush1.msra.mxu0 0.0
      %842 = vmatprep.subr.mxu0 0.0
      %843 = vmatpush1.msra.mxu0 0.0
      %844 = vmatprep.subr.mxu0 0.0
      %845 = vmatpush1.msra.mxu0 0.0
      %846 = vmatprep.subr.mxu0 0.0
      %847 = vmatpush1.msra.mxu0 0.0
      %848 = vmatprep.subr.mxu0 0.0
      %849 = vmatpush1.msra.mxu0 0.0
      %850 = vmatprep.subr.mxu0 0.0
      %851 = vmatpush1.msra.mxu0 0.0
      %852 = vmatprep.subr.mxu0 0.0
      %853 = vmatpush1.msra.mxu0 0.0
      %854 = vmatprep.subr.mxu0 0.0
      %855 = vmatpush1.msra.mxu0 0.0
      %856 = vmatprep.subr.mxu0 0.0
      %857 = vmatpush1.msra.mxu0 0.0
      %858 = vmatprep.subr.mxu0 0.0
      %859 = vmatpush1.msra.mxu0 0.0
      %860 = vmatprep.subr.mxu0 0.0
      %861 = vmatpush1.msra.mxu0 0.0
      %862 = vmatprep.subr.mxu0 0.0
      %863 = vmatpush1.msra.mxu0 0.0
      %864 = vmatprep.subr.mxu0 0.0
      %865 = vmatpush1.msra.mxu0 0.0
      %866 = vmatprep.subr.mxu0 0.0
      %867 = vmatpush1.msra.mxu0 0.0
      %868 = vmatprep.subr.mxu0 0.0
      %869 = vmatpush1.msra.mxu0 0.0
      %870 = vmatprep.subr.mxu0 0.0
      %871 = vmatpush1.msra.mxu0 0.0
      %872 = vmatprep.subr.mxu0 0.0
      %873 = vmatpush1.msra.mxu0 0.0
      %874 = vmatprep.mubr.f32.mxu0 0.0
      %875 = vmatmul.mubr.f32.gmra.mrb[0].mxu0 %v802
      %v876 = vpop.f32.mrb[0].mxu0
      %v877 = vadd.f32 0.0, %v876
      %v878 = vpop.f32.mrb[0].mxu0
      %v879 = vadd.f32 0.0, %v878
      %880 = vdwg.mxu0
      %v883 = vcombine.low %v877, %v879
      %v885 = vadd.f32 %v798, %v883
      %886 = vst [vmem:[#allocation2] sm:$0xff] %v885
      %v887 = vld [vmem:[#allocation2] sm:$0xff]
      %s888 = scalar_lea.vmem %s1, 28
      %v889 = vld [vmem:[%s888] sm:$0xf]
      %v891 = vsel %vm235, %v889, 0
      %v894 = vsel %vm239, %v212, 0
      %v897 = vsel %vm239, %v213, 0
      %899 = vmatprep.subr.mxu0 %v897
      %900 = vmatpush1.msra.mxu0 %v894
      %901 = vmatprep.subr.mxu0 0.0
      %902 = vmatpush1.msra.mxu0 0.0
      %903 = vmatprep.subr.mxu0 0.0
      %904 = vmatpush1.msra.mxu0 0.0
      %905 = vmatprep.subr.mxu0 0.0
      %906 = vmatpush1.msra.mxu0 0.0
      %907 = vmatprep.subr.mxu0 0.0
      %908 = vmatpush1.msra.mxu0 0.0
      %909 = vmatprep.subr.mxu0 0.0
      %910 = vmatpush1.msra.mxu0 0.0
      %911 = vmatprep.subr.mxu0 0.0
      %912 = vmatpush1.msra.mxu0 0.0
      %913 = vmatprep.subr.mxu0 0.0
      %914 = vmatpush1.msra.mxu0 0.0
      %915 = vmatprep.subr.mxu0 0.0
      %916 = vmatpush1.msra.mxu0 0.0
      %917 = vmatprep.subr.mxu0 0.0
      %918 = vmatpush1.msra.mxu0 0.0
      %919 = vmatprep.subr.mxu0 0.0
      %920 = vmatpush1.msra.mxu0 0.0
      %921 = vmatprep.subr.mxu0 0.0
      %922 = vmatpush1.msra.mxu0 0.0
      %923 = vmatprep.subr.mxu0 0.0
      %924 = vmatpush1.msra.mxu0 0.0
      %925 = vmatprep.subr.mxu0 0.0
      %926 = vmatpush1.msra.mxu0 0.0
      %927 = vmatprep.subr.mxu0 0.0
      %928 = vmatpush1.msra.mxu0 0.0
      %929 = vmatprep.subr.mxu0 0.0
      %930 = vmatpush1.msra.mxu0 0.0
      %931 = vmatprep.subr.mxu0 0.0
      %932 = vmatpush1.msra.mxu0 0.0
      %933 = vmatprep.subr.mxu0 0.0
      %934 = vmatpush1.msra.mxu0 0.0
      %935 = vmatprep.subr.mxu0 0.0
      %936 = vmatpush1.msra.mxu0 0.0
      %937 = vmatprep.subr.mxu0 0.0
      %938 = vmatpush1.msra.mxu0 0.0
      %939 = vmatprep.subr.mxu0 0.0
      %940 = vmatpush1.msra.mxu0 0.0
      %941 = vmatprep.subr.mxu0 0.0
      %942 = vmatpush1.msra.mxu0 0.0
      %943 = vmatprep.subr.mxu0 0.0
      %944 = vmatpush1.msra.mxu0 0.0
      %945 = vmatprep.subr.mxu0 0.0
      %946 = vmatpush1.msra.mxu0 0.0
      %947 = vmatprep.subr.mxu0 0.0
      %948 = vmatpush1.msra.mxu0 0.0
      %949 = vmatprep.subr.mxu0 0.0
      %950 = vmatpush1.msra.mxu0 0.0
      %951 = vmatprep.subr.mxu0 0.0
      %952 = vmatpush1.msra.mxu0 0.0
      %953 = vmatprep.subr.mxu0 0.0
      %954 = vmatpush1.msra.mxu0 0.0
      %955 = vmatprep.subr.mxu0 0.0
      %956 = vmatpush1.msra.mxu0 0.0
      %957 = vmatprep.subr.mxu0 0.0
      %958 = vmatpush1.msra.mxu0 0.0
      %959 = vmatprep.subr.mxu0 0.0
      %960 = vmatpush1.msra.mxu0 0.0
      %961 = vmatprep.subr.mxu0 0.0
      %962 = vmatpush1.msra.mxu0 0.0
      %963 = vmatprep.mubr.f32.mxu0 0.0
      %964 = vmatmul.mubr.f32.gmra.mrb[0].mxu0 %v891
      %v965 = vpop.f32.mrb[0].mxu0
      %v966 = vadd.f32 0.0, %v965
      %v967 = vpop.f32.mrb[0].mxu0
      %v968 = vadd.f32 0.0, %v967
      %969 = vdwg.mxu0
      %v972 = vcombine.low %v966, %v968
      %v974 = vadd.f32 %v887, %v972
      %975 = vst [vmem:[#allocation2] sm:$0xff] %v974
      %v976 = vld [vmem:[#allocation2] sm:$0xff]
      %s977 = scalar_lea.vmem %s1, 32
      %v978 = vld [vmem:[%s977] sm:$0xf]
      %v980 = vsel %vm235, %v978, 0
      %v983 = vsel %vm239, %v796, 0
      %v986 = vsel %vm239, %v797, 0
      %988 = vmatprep.subr.mxu0 %v986
      %989 = vmatpush1.msra.mxu0 %v983
      %990 = vmatprep.subr.mxu0 0.0
      %991 = vmatpush1.msra.mxu0 0.0
      %992 = vmatprep.subr.mxu0 0.0
      %993 = vmatpush1.msra.mxu0 0.0
      %994 = vmatprep.subr.mxu0 0.0
      %995 = vmatpush1.msra.mxu0 0.0
      %996 = vmatprep.subr.mxu0 0.0
      %997 = vmatpush1.msra.mxu0 0.0
      %998 = vmatprep.subr.mxu0 0.0
      %999 = vmatpush1.msra.mxu0 0.0
      %1000 = vmatprep.subr.mxu0 0.0
      %1001 = vmatpush1.msra.mxu0 0.0
      %1002 = vmatprep.subr.mxu0 0.0
      %1003 = vmatpush1.msra.mxu0 0.0
      %1004 = vmatprep.subr.mxu0 0.0
      %1005 = vmatpush1.msra.mxu0 0.0
      %1006 = vmatprep.subr.mxu0 0.0
      %1007 = vmatpush1.msra.mxu0 0.0
      %1008 = vmatprep.subr.mxu0 0.0
      %1009 = vmatpush1.msra.mxu0 0.0
      %1010 = vmatprep.subr.mxu0 0.0
      %1011 = vmatpush1.msra.mxu0 0.0
      %1012 = vmatprep.subr.mxu0 0.0
      %1013 = vmatpush1.msra.mxu0 0.0
      %1014 = vmatprep.subr.mxu0 0.0
      %1015 = vmatpush1.msra.mxu0 0.0
      %1016 = vmatprep.subr.mxu0 0.0
      %1017 = vmatpush1.msra.mxu0 0.0
      %1018 = vmatprep.subr.mxu0 0.0
      %1019 = vmatpush1.msra.mxu0 0.0
      %1020 = vmatprep.subr.mxu0 0.0
      %1021 = vmatpush1.msra.mxu0 0.0
      %1022 = vmatprep.subr.mxu0 0.0
      %1023 = vmatpush1.msra.mxu0 0.0
      %1024 = vmatprep.subr.mxu0 0.0
      %1025 = vmatpush1.msra.mxu0 0.0
      %1026 = vmatprep.subr.mxu0 0.0
      %1027 = vmatpush1.msra.mxu0 0.0
      %1028 = vmatprep.subr.mxu0 0.0
      %1029 = vmatpush1.msra.mxu0 0.0
      %1030 = vmatprep.subr.mxu0 0.0
      %1031 = vmatpush1.msra.mxu0 0.0
      %1032 = vmatprep.subr.mxu0 0.0
      %1033 = vmatpush1.msra.mxu0 0.0
      %1034 = vmatprep.subr.mxu0 0.0
      %1035 = vmatpush1.msra.mxu0 0.0
      %1036 = vmatprep.subr.mxu0 0.0
      %1037 = vmatpush1.msra.mxu0 0.0
      %1038 = vmatprep.subr.mxu0 0.0
      %1039 = vmatpush1.msra.mxu0 0.0
      %1040 = vmatprep.subr.mxu0 0.0
      %1041 = vmatpush1.msra.mxu0 0.0
      %1042 = vmatprep.subr.mxu0 0.0
      %1043 = vmatpush1.msra.mxu0 0.0
      %1044 = vmatprep.subr.mxu0 0.0
      %1045 = vmatpush1.msra.mxu0 0.0
      %1046 = vmatprep.subr.mxu0 0.0
      %1047 = vmatpush1.msra.mxu0 0.0
      %1048 = vmatprep.subr.mxu0 0.0
      %1049 = vmatpush1.msra.mxu0 0.0
      %1050 = vmatprep.subr.mxu0 0.0
      %1051 = vmatpush1.msra.mxu0 0.0
      %1052 = vmatprep.mubr.f32.mxu0 0.0
      %1053 = vmatmul.mubr.f32.gmra.mrb[0].mxu0 %v980
      %v1054 = vpop.f32.mrb[0].mxu0
      %v1055 = vadd.f32 0.0, %v1054
      %v1056 = vpop.f32.mrb[0].mxu0
      %v1057 = vadd.f32 0.0, %v1056
      %1058 = vdwg.mxu0
      %v1061 = vcombine.low %v1055, %v1057
      %v1063 = vadd.f32 %v976, %v1061
      %1064 = vst [vmem:[#allocation2] sm:$0xff] %v1063
      %v1065 = vld [vmem:[#allocation2] sm:$0xff]
      %v1067 = vcombine.high %v1065, %v1065
      %v1069 = vsel %vm239, %v1065, 0.0
      %v1070 = vsel %vm239, %v1067, 0.0
      %v1071 = vadd.f32 %v1069, %v1070
      %1072 = vadd.xlane.f32.xlu0 %v1071
      %v1073 = vpop.xlane.xlu0 %1072
      %v1074 = vmul.f32 %v1073, 0.00390625
      %v1075 = vmul.f32 %v1065, %v1065
      %v1077 = vcombine.high %v1075, %v1075
      %v1079 = vsel %vm239, %v1075, 0.0
      %v1080 = vsel %vm239, %v1077, 0.0
      %v1081 = vadd.f32 %v1079, %v1080
      %1082 = vadd.xlane.f32.xlu0 %v1081
      %v1083 = vpop.xlane.xlu0 %1082
      %v1084 = vmul.f32 %v1083, 0.00390625
      %v1085 = vmul.f32 %v1074, %v1074
      %v1086 = vsub.f32 %v1084, %v1085
      %v1087 = vmax.f32 %v1086, 0.0
      %v1090 = vunpack.c.l.s4 839922192
      %v1091 = vunpack.c.0.s8 %v1090
      %v1092 = vlaneseq
      %v1093 = vshrl.u32 %v1092, 7
      %v1094 = vsub.s32 %v1091, %v1093
      %v1095 = vrot.slane %v1074, %v1094
      %v1097 = vsub.f32 %v1065, %v1095
      %v1098 = vadd.f32 %v1087, 1e-05
      %v1099 = vrsqrt.pop %v1098
      %v1102 = vunpack.c.l.s4 839922192
      %v1103 = vunpack.c.0.s8 %v1102
      %v1104 = vlaneseq
      %v1105 = vshrl.u32 %v1104, 7
      %v1106 = vsub.s32 %v1103, %v1105
      %v1107 = vrot.slane %v1099, %v1106
      %v1109 = vmul.f32 %v1097, %v1107
      %v1110 = vmax.f32 %v1109, 0.0
      %v1112 = vcombine.high %v1110, %v1110
      %1114 = vrot.lane.b32.xlu0 %v1110, 16
      %v1115 = vpop.permute.xlu0 %1114
      %1116 = vrot.lane.b32.xlu0 %v1112, 16
      %v1117 = vpop.permute.xlu0 %1116
      %v1118 = vsel %vm174, %v1115, %v1117
      %v1119 = vsel %vm174, %v1117, %v1115
      %1120 = vrot.lane.b32.xlu0 %v1110, 112
      %v1121 = vpop.permute.xlu0 %1120
      %1122 = vrot.lane.b32.xlu0 %v1112, 112
      %v1123 = vpop.permute.xlu0 %1122
      %v1124 = vsel %vm207, %v1121, %v1123
      %v1125 = vsel %vm207, %v1123, %v1121
      %v1126 = vsel %vm174, %v1124, %v1119
      %v1127 = vsel %vm175, %v1125, %v1118
      %v1128 = vsel %vm176, %v1119, %v1124
      %v1129 = vsel %vm177, %v1118, %v1125
      %1130 = vst [vmem:[#allocation2] sm:$0xff] 0.0
      %1131 = vrot.lane.b32.xlu0 %v1126, 1
      %v1132 = vpop.permute.xlu0 %1131
      %1133 = vrot.lane.b32.xlu0 %v1127, 1
      %v1134 = vpop.permute.xlu0 %1133
      %v1135 = vsel %vm219, %v1132, %v1134
      %v1136 = vsel %vm219, %v1134, %v1132
      %1137 = vrot.lane.b32.xlu0 %v1126, 127
      %v1138 = vpop.permute.xlu0 %1137
      %1139 = vrot.lane.b32.xlu0 %v1127, 127
      %v1140 = vpop.permute.xlu0 %1139
      %v1141 = vsel %vm226, %v1138, %v1140
      %v1142 = vsel %vm226, %v1140, %v1138
      %v1143 = vsel %vm189, %v1141, %v1136
      %v1144 = vsel %vm190, %v1142, %v1135
      %v1145 = vsel %vm191, %v1136, %v1141
      %v1146 = vsel %vm192, %v1135, %v1142
      %v1147 = vld [vmem:[#allocation2] sm:$0xff]
      %v1148 = vld [vmem:[%s2] sm:$0xf]
      %v1150 = vsel %vm235, %v1148, 0
      %v1153 = vsel %vm239, %v1143, 0
      %v1156 = vsel %vm239, %v1144, 0
      %1158 = vmatprep.subr.mxu0 %v1156
      %1159 = vmatpush1.msra.mxu0 %v1153
      %1160 = vmatprep.subr.mxu0 0.0
      %1161 = vmatpush1.msra.mxu0 0.0
      %1162 = vmatprep.subr.mxu0 0.0
      %1163 = vmatpush1.msra.mxu0 0.0
      %1164 = vmatprep.subr.mxu0 0.0
      %1165 = vmatpush1.msra.mxu0 0.0
      %1166 = vmatprep.subr.mxu0 0.0
      %1167 = vmatpush1.msra.mxu0 0.0
      %1168 = vmatprep.subr.mxu0 0.0
      %1169 = vmatpush1.msra.mxu0 0.0
      %1170 = vmatprep.subr.mxu0 0.0
      %1171 = vmatpush1.msra.mxu0 0.0
      %1172 = vmatprep.subr.mxu0 0.0
      %1173 = vmatpush1.msra.mxu0 0.0
      %1174 = vmatprep.subr.mxu0 0.0
      %1175 = vmatpush1.msra.mxu0 0.0
      %1176 = vmatprep.subr.mxu0 0.0
      %1177 = vmatpush1.msra.mxu0 0.0
      %1178 = vmatprep.subr.mxu0 0.0
      %1179 = vmatpush1.msra.mxu0 0.0
      %1180 = vmatprep.subr.mxu0 0.0
      %1181 = vmatpush1.msra.mxu0 0.0
      %1182 = vmatprep.subr.mxu0 0.0
      %1183 = vmatpush1.msra.mxu0 0.0
      %1184 = vmatprep.subr.mxu0 0.0
      %1185 = vmatpush1.msra.mxu0 0.0
      %1186 = vmatprep.subr.mxu0 0.0
      %1187 = vmatpush1.msra.mxu0 0.0
      %1188 = vmatprep.subr.mxu0 0.0
      %1189 = vmatpush1.msra.mxu0 0.0
      %1190 = vmatprep.subr.mxu0 0.0
      %1191 = vmatpush1.msra.mxu0 0.0
      %1192 = vmatprep.subr.mxu0 0.0
      %1193 = vmatpush1.msra.mxu0 0.0
      %1194 = vmatprep.subr.mxu0 0.0
      %1195 = vmatpush1.msra.mxu0 0.0
      %1196 = vmatprep.subr.mxu0 0.0
      %1197 = vmatpush1.msra.mxu0 0.0
      %1198 = vmatprep.subr.mxu0 0.0
      %1199 = vmatpush1.msra.mxu0 0.0
      %1200 = vmatprep.subr.mxu0 0.0
      %1201 = vmatpush1.msra.mxu0 0.0
      %1202 = vmatprep.subr.mxu0 0.0
      %1203 = vmatpush1.msra.mxu0 0.0
      %1204 = vmatprep.subr.mxu0 0.0
      %1205 = vmatpush1.msra.mxu0 0.0
      %1206 = vmatprep.subr.mxu0 0.0
      %1207 = vmatpush1.msra.mxu0 0.0
      %1208 = vmatprep.subr.mxu0 0.0
      %1209 = vmatpush1.msra.mxu0 0.0
      %1210 = vmatprep.subr.mxu0 0.0
      %1211 = vmatpush1.msra.mxu0 0.0
      %1212 = vmatprep.subr.mxu0 0.0
      %1213 = vmatpush1.msra.mxu0 0.0
      %1214 = vmatprep.subr.mxu0 0.0
      %1215 = vmatpush1.msra.mxu0 0.0
      %1216 = vmatprep.subr.mxu0 0.0
      %1217 = vmatpush1.msra.mxu0 0.0
      %1218 = vmatprep.subr.mxu0 0.0
      %1219 = vmatpush1.msra.mxu0 0.0
      %1220 = vmatprep.subr.mxu0 0.0
      %1221 = vmatpush1.msra.mxu0 0.0
      %1222 = vmatprep.mubr.f32.mxu0 0.0
      %1223 = vmatmul.mubr.f32.gmra.mrb[0].mxu0 %v1150
      %v1224 = vpop.f32.mrb[0].mxu0
      %v1225 = vadd.f32 0.0, %v1224
      %v1226 = vpop.f32.mrb[0].mxu0
      %v1227 = vadd.f32 0.0, %v1226
      %1228 = vdwg.mxu0
      %v1231 = vcombine.low %v1225, %v1227
      %v1233 = vadd.f32 %v1147, %v1231
      %1234 = vst [vmem:[#allocation2] sm:$0xff] %v1233
      %v1235 = vld [vmem:[#allocation2] sm:$0xff]
      %s1236 = scalar_lea.vmem %s2, 4
      %v1237 = vld [vmem:[%s1236] sm:$0xf]
      %v1239 = vsel %vm235, %v1237, 0
      %v1242 = vsel %vm239, %v1126, 0
      %v1245 = vsel %vm239, %v1127, 0
      %1247 = vmatprep.subr.mxu0 %v1245
      %1248 = vmatpush1.msra.mxu0 %v1242
      %1249 = vmatprep.subr.mxu0 0.0
      %1250 = vmatpush1.msra.mxu0 0.0
      %1251 = vmatprep.subr.mxu0 0.0
      %1252 = vmatpush1.msra.mxu0 0.0
      %1253 = vmatprep.subr.mxu0 0.0
      %1254 = vmatpush1.msra.mxu0 0.0
      %1255 = vmatprep.subr.mxu0 0.0
      %1256 = vmatpush1.msra.mxu0 0.0
      %1257 = vmatprep.subr.mxu0 0.0
      %1258 = vmatpush1.msra.mxu0 0.0
      %1259 = vmatprep.subr.mxu0 0.0
      %1260 = vmatpush1.msra.mxu0 0.0
      %1261 = vmatprep.subr.mxu0 0.0
      %1262 = vmatpush1.msra.mxu0 0.0
      %1263 = vmatprep.subr.mxu0 0.0
      %1264 = vmatpush1.msra.mxu0 0.0
      %1265 = vmatprep.subr.mxu0 0.0
      %1266 = vmatpush1.msra.mxu0 0.0
      %1267 = vmatprep.subr.mxu0 0.0
      %1268 = vmatpush1.msra.mxu0 0.0
      %1269 = vmatprep.subr.mxu0 0.0
      %1270 = vmatpush1.msra.mxu0 0.0
      %1271 = vmatprep.subr.mxu0 0.0
      %1272 = vmatpush1.msra.mxu0 0.0
      %1273 = vmatprep.subr.mxu0 0.0
      %1274 = vmatpush1.msra.mxu0 0.0
      %1275 = vmatprep.subr.mxu0 0.0
      %1276 = vmatpush1.msra.mxu0 0.0
      %1277 = vmatprep.subr.mxu0 0.0
      %1278 = vmatpush1.msra.mxu0 0.0
      %1279 = vmatprep.subr.mxu0 0.0
      %1280 = vmatpush1.msra.mxu0 0.0
      %1281 = vmatprep.subr.mxu0 0.0
      %1282 = vmatpush1.msra.mxu0 0.0
      %1283 = vmatprep.subr.mxu0 0.0
      %1284 = vmatpush1.msra.mxu0 0.0
      %1285 = vmatprep.subr.mxu0 0.0
      %1286 = vmatpush1.msra.mxu0 0.0
      %1287 = vmatprep.subr.mxu0 0.0
      %1288 = vmatpush1.msra.mxu0 0.0
      %1289 = vmatprep.subr.mxu0 0.0
      %1290 = vmatpush1.msra.mxu0 0.0
      %1291 = vmatprep.subr.mxu0 0.0
      %1292 = vmatpush1.msra.mxu0 0.0
      %1293 = vmatprep.subr.mxu0 0.0
      %1294 = vmatpush1.msra.mxu0 0.0
      %1295 = vmatprep.subr.mxu0 0.0
      %1296 = vmatpush1.msra.mxu0 0.0
      %1297 = vmatprep.subr.mxu0 0.0
      %1298 = vmatpush1.msra.mxu0 0.0
      %1299 = vmatprep.subr.mxu0 0.0
      %1300 = vmatpush1.msra.mxu0 0.0
      %1301 = vmatprep.subr.mxu0 0.0
      %1302 = vmatpush1.msra.mxu0 0.0
      %1303 = vmatprep.subr.mxu0 0.0
      %1304 = vmatpush1.msra.mxu0 0.0
      %1305 = vmatprep.subr.mxu0 0.0
      %1306 = vmatpush1.msra.mxu0 0.0
      %1307 = vmatprep.subr.mxu0 0.0
      %1308 = vmatpush1.msra.mxu0 0.0
      %1309 = vmatprep.subr.mxu0 0.0
      %1310 = vmatpush1.msra.mxu0 0.0
      %1311 = vmatprep.mubr.f32.mxu0 0.0
      %1312 = vmatmul.mubr.f32.gmra.mrb[0].mxu0 %v1239
      %v1313 = vpop.f32.mrb[0].mxu0
      %v1314 = vadd.f32 0.0, %v1313
      %v1315 = vpop.f32.mrb[0].mxu0
      %v1316 = vadd.f32 0.0, %v1315
      %1317 = vdwg.mxu0
      %v1320 = vcombine.low %v1314, %v1316
      %v1322 = vadd.f32 %v1235, %v1320
      %1323 = vst [vmem:[#allocation2] sm:$0xff] %v1322
      %v1324 = vld [vmem:[#allocation2] sm:$0xff]
      %s1325 = scalar_lea.vmem %s2, 8
      %v1326 = vld [vmem:[%s1325] sm:$0xf]
      %v1328 = vsel %vm235, %v1326, 0
      %v1331 = vsel %vm239, %v1145, 0
      %v1334 = vsel %vm239, %v1146, 0
      %1336 = vmatprep.subr.mxu0 %v1334
      %1337 = vmatpush1.msra.mxu0 %v1331
      %1338 = vmatprep.subr.mxu0 0.0
      %1339 = vmatpush1.msra.mxu0 0.0
      %1340 = vmatprep.subr.mxu0 0.0
      %1341 = vmatpush1.msra.mxu0 0.0
      %1342 = vmatprep.subr.mxu0 0.0
      %1343 = vmatpush1.msra.mxu0 0.0
      %1344 = vmatprep.subr.mxu0 0.0
      %1345 = vmatpush1.msra.mxu0 0.0
      %1346 = vmatprep.subr.mxu0 0.0
      %1347 = vmatpush1.msra.mxu0 0.0
      %1348 = vmatprep.subr.mxu0 0.0
      %1349 = vmatpush1.msra.mxu0 0.0
      %1350 = vmatprep.subr.mxu0 0.0
      %1351 = vmatpush1.msra.mxu0 0.0
      %1352 = vmatprep.subr.mxu0 0.0
      %1353 = vmatpush1.msra.mxu0 0.0
      %1354 = vmatprep.subr.mxu0 0.0
      %1355 = vmatpush1.msra.mxu0 0.0
      %1356 = vmatprep.subr.mxu0 0.0
      %1357 = vmatpush1.msra.mxu0 0.0
      %1358 = vmatprep.subr.mxu0 0.0
      %1359 = vmatpush1.msra.mxu0 0.0
      %1360 = vmatprep.subr.mxu0 0.0
      %1361 = vmatpush1.msra.mxu0 0.0
      %1362 = vmatprep.subr.mxu0 0.0
      %1363 = vmatpush1.msra.mxu0 0.0
      %1364 = vmatprep.subr.mxu0 0.0
      %1365 = vmatpush1.msra.mxu0 0.0
      %1366 = vmatprep.subr.mxu0 0.0
      %1367 = vmatpush1.msra.mxu0 0.0
      %1368 = vmatprep.subr.mxu0 0.0
      %1369 = vmatpush1.msra.mxu0 0.0
      %1370 = vmatprep.subr.mxu0 0.0
      %1371 = vmatpush1.msra.mxu0 0.0
      %1372 = vmatprep.subr.mxu0 0.0
      %1373 = vmatpush1.msra.mxu0 0.0
      %1374 = vmatprep.subr.mxu0 0.0
      %1375 = vmatpush1.msra.mxu0 0.0
      %1376 = vmatprep.subr.mxu0 0.0
      %1377 = vmatpush1.msra.mxu0 0.0
      %1378 = vmatprep.subr.mxu0 0.0
      %1379 = vmatpush1.msra.mxu0 0.0
      %1380 = vmatprep.subr.mxu0 0.0
      %1381 = vmatpush1.msra.mxu0 0.0
      %1382 = vmatprep.subr.mxu0 0.0
      %1383 = vmatpush1.msra.mxu0 0.0
      %1384 = vmatprep.subr.mxu0 0.0
      %1385 = vmatpush1.msra.mxu0 0.0
      %1386 = vmatprep.subr.mxu0 0.0
      %1387 = vmatpush1.msra.mxu0 0.0
      %1388 = vmatprep.subr.mxu0 0.0
      %1389 = vmatpush1.msra.mxu0 0.0
      %1390 = vmatprep.subr.mxu0 0.0
      %1391 = vmatpush1.msra.mxu0 0.0
      %1392 = vmatprep.subr.mxu0 0.0
      %1393 = vmatpush1.msra.mxu0 0.0
      %1394 = vmatprep.subr.mxu0 0.0
      %1395 = vmatpush1.msra.mxu0 0.0
      %1396 = vmatprep.subr.mxu0 0.0
      %1397 = vmatpush1.msra.mxu0 0.0
      %1398 = vmatprep.subr.mxu0 0.0
      %1399 = vmatpush1.msra.mxu0 0.0
      %1400 = vmatprep.mubr.f32.mxu0 0.0
      %1401 = vmatmul.mubr.f32.gmra.mrb[0].mxu0 %v1328
      %v1402 = vpop.f32.mrb[0].mxu0
      %v1403 = vadd.f32 0.0, %v1402
      %v1404 = vpop.f32.mrb[0].mxu0
      %v1405 = vadd.f32 0.0, %v1404
      %1406 = vdwg.mxu0
      %v1409 = vcombine.low %v1403, %v1405
      %v1411 = vadd.f32 %v1324, %v1409
      %1412 = vst [vmem:[#allocation2] sm:$0xff] %v1411
      %1413 = vrot.lane.b32.xlu0 %v1110, 1
      %v1414 = vpop.permute.xlu0 %1413
      %1415 = vrot.lane.b32.xlu0 %v1112, 1
      %v1416 = vpop.permute.xlu0 %1415
      %v1417 = vsel %vm219, %v1414, %v1416
      %v1418 = vsel %vm219, %v1416, %v1414
      %1419 = vrot.lane.b32.xlu0 %v1110, 127
      %v1420 = vpop.permute.xlu0 %1419
      %1421 = vrot.lane.b32.xlu0 %v1112, 127
      %v1422 = vpop.permute.xlu0 %1421
      %v1423 = vsel %vm226, %v1420, %v1422
      %v1424 = vsel %vm226, %v1422, %v1420
      %v1425 = vsel %vm189, %v1423, %v1418
      %v1426 = vsel %vm190, %v1424, %v1417
      %v1427 = vsel %vm191, %v1418, %v1423
      %v1428 = vsel %vm192, %v1417, %v1424
      %v1429 = vld [vmem:[#allocation2] sm:$0xff]
      %s1430 = scalar_lea.vmem %s2, 12
      %v1431 = vld [vmem:[%s1430] sm:$0xf]
      %v1433 = vsel %vm235, %v1431, 0
      %v1436 = vsel %vm239, %v1425, 0
      %v1439 = vsel %vm239, %v1426, 0
      %1441 = vmatprep.subr.mxu0 %v1439
      %1442 = vmatpush1.msra.mxu0 %v1436
      %1443 = vmatprep.subr.mxu0 0.0
      %1444 = vmatpush1.msra.mxu0 0.0
      %1445 = vmatprep.subr.mxu0 0.0
      %1446 = vmatpush1.msra.mxu0 0.0
      %1447 = vmatprep.subr.mxu0 0.0
      %1448 = vmatpush1.msra.mxu0 0.0
      %1449 = vmatprep.subr.mxu0 0.0
      %1450 = vmatpush1.msra.mxu0 0.0
      %1451 = vmatprep.subr.mxu0 0.0
      %1452 = vmatpush1.msra.mxu0 0.0
      %1453 = vmatprep.subr.mxu0 0.0
      %1454 = vmatpush1.msra.mxu0 0.0
      %1455 = vmatprep.subr.mxu0 0.0
      %1456 = vmatpush1.msra.mxu0 0.0
      %1457 = vmatprep.subr.mxu0 0.0
      %1458 = vmatpush1.msra.mxu0 0.0
      %1459 = vmatprep.subr.mxu0 0.0
      %1460 = vmatpush1.msra.mxu0 0.0
      %1461 = vmatprep.subr.mxu0 0.0
      %1462 = vmatpush1.msra.mxu0 0.0
      %1463 = vmatprep.subr.mxu0 0.0
      %1464 = vmatpush1.msra.mxu0 0.0
      %1465 = vmatprep.subr.mxu0 0.0
      %1466 = vmatpush1.msra.mxu0 0.0
      %1467 = vmatprep.subr.mxu0 0.0
      %1468 = vmatpush1.msra.mxu0 0.0
      %1469 = vmatprep.subr.mxu0 0.0
      %1470 = vmatpush1.msra.mxu0 0.0
      %1471 = vmatprep.subr.mxu0 0.0
      %1472 = vmatpush1.msra.mxu0 0.0
      %1473 = vmatprep.subr.mxu0 0.0
      %1474 = vmatpush1.msra.mxu0 0.0
      %1475 = vmatprep.subr.mxu0 0.0
      %1476 = vmatpush1.msra.mxu0 0.0
      %1477 = vmatprep.subr.mxu0 0.0
      %1478 = vmatpush1.msra.mxu0 0.0
      %1479 = vmatprep.subr.mxu0 0.0
      %1480 = vmatpush1.msra.mxu0 0.0
      %1481 = vmatprep.subr.mxu0 0.0
      %1482 = vmatpush1.msra.mxu0 0.0
      %1483 = vmatprep.subr.mxu0 0.0
      %1484 = vmatpush1.msra.mxu0 0.0
      %1485 = vmatprep.subr.mxu0 0.0
      %1486 = vmatpush1.msra.mxu0 0.0
      %1487 = vmatprep.subr.mxu0 0.0
      %1488 = vmatpush1.msra.mxu0 0.0
      %1489 = vmatprep.subr.mxu0 0.0
      %1490 = vmatpush1.msra.mxu0 0.0
      %1491 = vmatprep.subr.mxu0 0.0
      %1492 = vmatpush1.msra.mxu0 0.0
      %1493 = vmatprep.subr.mxu0 0.0
      %1494 = vmatpush1.msra.mxu0 0.0
      %1495 = vmatprep.subr.mxu0 0.0
      %1496 = vmatpush1.msra.mxu0 0.0
      %1497 = vmatprep.subr.mxu0 0.0
      %1498 = vmatpush1.msra.mxu0 0.0
      %1499 = vmatprep.subr.mxu0 0.0
      %1500 = vmatpush1.msra.mxu0 0.0
      %1501 = vmatprep.subr.mxu0 0.0
      %1502 = vmatpush1.msra.mxu0 0.0
      %1503 = vmatprep.subr.mxu0 0.0
      %1504 = vmatpush1.msra.mxu0 0.0
      %1505 = vmatprep.mubr.f32.mxu0 0.0
      %1506 = vmatmul.mubr.f32.gmra.mrb[0].mxu0 %v1433
      %v1507 = vpop.f32.mrb[0].mxu0
      %v1508 = vadd.f32 0.0, %v1507
      %v1509 = vpop.f32.mrb[0].mxu0
      %v1510 = vadd.f32 0.0, %v1509
      %1511 = vdwg.mxu0
      %v1514 = vcombine.low %v1508, %v1510
      %v1516 = vadd.f32 %v1429, %v1514
      %1517 = vst [vmem:[#allocation2] sm:$0xff] %v1516
      %v1518 = vld [vmem:[#allocation2] sm:$0xff]
      %s1519 = scalar_lea.vmem %s2, 16
      %v1520 = vld [vmem:[%s1519] sm:$0xf]
      %v1522 = vsel %vm235, %v1520, 0
      %v1524 = vsel %vm239, %v1110, 0
      %v1526 = vsel %vm239, %v1112, 0
      %1528 = vmatprep.subr.mxu0 %v1526
      %1529 = vmatpush1.msra.mxu0 %v1524
      %1530 = vmatprep.subr.mxu0 0.0
      %1531 = vmatpush1.msra.mxu0 0.0
      %1532 = vmatprep.subr.mxu0 0.0
      %1533 = vmatpush1.msra.mxu0 0.0
      %1534 = vmatprep.subr.mxu0 0.0
      %1535 = vmatpush1.msra.mxu0 0.0
      %1536 = vmatprep.subr.mxu0 0.0
      %1537 = vmatpush1.msra.mxu0 0.0
      %1538 = vmatprep.subr.mxu0 0.0
      %1539 = vmatpush1.msra.mxu0 0.0
      %1540 = vmatprep.subr.mxu0 0.0
      %1541 = vmatpush1.msra.mxu0 0.0
      %1542 = vmatprep.subr.mxu0 0.0
      %1543 = vmatpush1.msra.mxu0 0.0
      %1544 = vmatprep.subr.mxu0 0.0
      %1545 = vmatpush1.msra.mxu0 0.0
      %1546 = vmatprep.subr.mxu0 0.0
      %1547 = vmatpush1.msra.mxu0 0.0
      %1548 = vmatprep.subr.mxu0 0.0
      %1549 = vmatpush1.msra.mxu0 0.0
      %1550 = vmatprep.subr.mxu0 0.0
      %1551 = vmatpush1.msra.mxu0 0.0
      %1552 = vmatprep.subr.mxu0 0.0
      %1553 = vmatpush1.msra.mxu0 0.0
      %1554 = vmatprep.subr.mxu0 0.0
      %1555 = vmatpush1.msra.mxu0 0.0
      %1556 = vmatprep.subr.mxu0 0.0
      %1557 = vmatpush1.msra.mxu0 0.0
      %1558 = vmatprep.subr.mxu0 0.0
      %1559 = vmatpush1.msra.mxu0 0.0
      %1560 = vmatprep.subr.mxu0 0.0
      %1561 = vmatpush1.msra.mxu0 0.0
      %1562 = vmatprep.subr.mxu0 0.0
      %1563 = vmatpush1.msra.mxu0 0.0
      %1564 = vmatprep.subr.mxu0 0.0
      %1565 = vmatpush1.msra.mxu0 0.0
      %1566 = vmatprep.subr.mxu0 0.0
      %1567 = vmatpush1.msra.mxu0 0.0
      %1568 = vmatprep.subr.mxu0 0.0
      %1569 = vmatpush1.msra.mxu0 0.0
      %1570 = vmatprep.subr.mxu0 0.0
      %1571 = vmatpush1.msra.mxu0 0.0
      %1572 = vmatprep.subr.mxu0 0.0
      %1573 = vmatpush1.msra.mxu0 0.0
      %1574 = vmatprep.subr.mxu0 0.0
      %1575 = vmatpush1.msra.mxu0 0.0
      %1576 = vmatprep.subr.mxu0 0.0
      %1577 = vmatpush1.msra.mxu0 0.0
      %1578 = vmatprep.subr.mxu0 0.0
      %1579 = vmatpush1.msra.mxu0 0.0
      %1580 = vmatprep.subr.mxu0 0.0
      %1581 = vmatpush1.msra.mxu0 0.0
      %1582 = vmatprep.subr.mxu0 0.0
      %1583 = vmatpush1.msra.mxu0 0.0
      %1584 = vmatprep.subr.mxu0 0.0
      %1585 = vmatpush1.msra.mxu0 0.0
      %1586 = vmatprep.subr.mxu0 0.0
      %1587 = vmatpush1.msra.mxu0 0.0
      %1588 = vmatprep.subr.mxu0 0.0
      %1589 = vmatpush1.msra.mxu0 0.0
      %1590 = vmatprep.subr.mxu0 0.0
      %1591 = vmatpush1.msra.mxu0 0.0
      %1592 = vmatprep.mubr.f32.mxu0 0.0
      %1593 = vmatmul.mubr.f32.gmra.mrb[0].mxu0 %v1522
      %v1594 = vpop.f32.mrb[0].mxu0
      %v1595 = vadd.f32 0.0, %v1594
      %v1596 = vpop.f32.mrb[0].mxu0
      %v1597 = vadd.f32 0.0, %v1596
      %1598 = vdwg.mxu0
      %v1601 = vcombine.low %v1595, %v1597
      %v1603 = vadd.f32 %v1518, %v1601
      %1604 = vst [vmem:[#allocation2] sm:$0xff] %v1603
      %v1605 = vld [vmem:[#allocation2] sm:$0xff]
      %s1606 = scalar_lea.vmem %s2, 20
      %v1607 = vld [vmem:[%s1606] sm:$0xf]
      %v1609 = vsel %vm235, %v1607, 0
      %v1612 = vsel %vm239, %v1427, 0
      %v1615 = vsel %vm239, %v1428, 0
      %1617 = vmatprep.subr.mxu0 %v1615
      %1618 = vmatpush1.msra.mxu0 %v1612
      %1619 = vmatprep.subr.mxu0 0.0
      %1620 = vmatpush1.msra.mxu0 0.0
      %1621 = vmatprep.subr.mxu0 0.0
      %1622 = vmatpush1.msra.mxu0 0.0
      %1623 = vmatprep.subr.mxu0 0.0
      %1624 = vmatpush1.msra.mxu0 0.0
      %1625 = vmatprep.subr.mxu0 0.0
      %1626 = vmatpush1.msra.mxu0 0.0
      %1627 = vmatprep.subr.mxu0 0.0
      %1628 = vmatpush1.msra.mxu0 0.0
      %1629 = vmatprep.subr.mxu0 0.0
      %1630 = vmatpush1.msra.mxu0 0.0
      %1631 = vmatprep.subr.mxu0 0.0
      %1632 = vmatpush1.msra.mxu0 0.0
      %1633 = vmatprep.subr.mxu0 0.0
      %1634 = vmatpush1.msra.mxu0 0.0
      %1635 = vmatprep.subr.mxu0 0.0
      %1636 = vmatpush1.msra.mxu0 0.0
      %1637 = vmatprep.subr.mxu0 0.0
      %1638 = vmatpush1.msra.mxu0 0.0
      %1639 = vmatprep.subr.mxu0 0.0
      %1640 = vmatpush1.msra.mxu0 0.0
      %1641 = vmatprep.subr.mxu0 0.0
      %1642 = vmatpush1.msra.mxu0 0.0
      %1643 = vmatprep.subr.mxu0 0.0
      %1644 = vmatpush1.msra.mxu0 0.0
      %1645 = vmatprep.subr.mxu0 0.0
      %1646 = vmatpush1.msra.mxu0 0.0
      %1647 = vmatprep.subr.mxu0 0.0
      %1648 = vmatpush1.msra.mxu0 0.0
      %1649 = vmatprep.subr.mxu0 0.0
      %1650 = vmatpush1.msra.mxu0 0.0
      %1651 = vmatprep.subr.mxu0 0.0
      %1652 = vmatpush1.msra.mxu0 0.0
      %1653 = vmatprep.subr.mxu0 0.0
      %1654 = vmatpush1.msra.mxu0 0.0
      %1655 = vmatprep.subr.mxu0 0.0
      %1656 = vmatpush1.msra.mxu0 0.0
      %1657 = vmatprep.subr.mxu0 0.0
      %1658 = vmatpush1.msra.mxu0 0.0
      %1659 = vmatprep.subr.mxu0 0.0
      %1660 = vmatpush1.msra.mxu0 0.0
      %1661 = vmatprep.subr.mxu0 0.0
      %1662 = vmatpush1.msra.mxu0 0.0
      %1663 = vmatprep.subr.mxu0 0.0
      %1664 = vmatpush1.msra.mxu0 0.0
      %1665 = vmatprep.subr.mxu0 0.0
      %1666 = vmatpush1.msra.mxu0 0.0
      %1667 = vmatprep.subr.mxu0 0.0
      %1668 = vmatpush1.msra.mxu0 0.0
      %1669 = vmatprep.subr.mxu0 0.0
      %1670 = vmatpush1.msra.mxu0 0.0
      %1671 = vmatprep.subr.mxu0 0.0
      %1672 = vmatpush1.msra.mxu0 0.0
      %1673 = vmatprep.subr.mxu0 0.0
      %1674 = vmatpush1.msra.mxu0 0.0
      %1675 = vmatprep.subr.mxu0 0.0
      %1676 = vmatpush1.msra.mxu0 0.0
      %1677 = vmatprep.subr.mxu0 0.0
      %1678 = vmatpush1.msra.mxu0 0.0
      %1679 = vmatprep.subr.mxu0 0.0
      %1680 = vmatpush1.msra.mxu0 0.0
      %1681 = vmatprep.mubr.f32.mxu0 0.0
      %1682 = vmatmul.mubr.f32.gmra.mrb[0].mxu0 %v1609
      %v1683 = vpop.f32.mrb[0].mxu0
      %v1684 = vadd.f32 0.0, %v1683
      %v1685 = vpop.f32.mrb[0].mxu0
      %v1686 = vadd.f32 0.0, %v1685
      %1687 = vdwg.mxu0
      %v1690 = vcombine.low %v1684, %v1686
      %v1692 = vadd.f32 %v1605, %v1690
      %1693 = vst [vmem:[#allocation2] sm:$0xff] %v1692
      %1694 = vrot.lane.b32.xlu0 %v1128, 1
      %v1695 = vpop.permute.xlu0 %1694
      %1696 = vrot.lane.b32.xlu0 %v1129, 1
      %v1697 = vpop.permute.xlu0 %1696
      %v1698 = vsel %vm219, %v1695, %v1697
      %v1699 = vsel %vm219, %v1697, %v1695
      %1700 = vrot.lane.b32.xlu0 %v1128, 127
      %v1701 = vpop.permute.xlu0 %1700
      %1702 = vrot.lane.b32.xlu0 %v1129, 127
      %v1703 = vpop.permute.xlu0 %1702
      %v1704 = vsel %vm226, %v1701, %v1703
      %v1705 = vsel %vm226, %v1703, %v1701
      %v1706 = vsel %vm189, %v1704, %v1699
      %v1707 = vsel %vm190, %v1705, %v1698
      %v1708 = vsel %vm191, %v1699, %v1704
      %v1709 = vsel %vm192, %v1698, %v1705
      %v1710 = vld [vmem:[#allocation2] sm:$0xff]
      %s1711 = scalar_lea.vmem %s2, 24
      %v1712 = vld [vmem:[%s1711] sm:$0xf]
      %v1714 = vsel %vm235, %v1712, 0
      %v1717 = vsel %vm239, %v1706, 0
      %v1720 = vsel %vm239, %v1707, 0
      %1722 = vmatprep.subr.mxu0 %v1720
      %1723 = vmatpush1.msra.mxu0 %v1717
      %1724 = vmatprep.subr.mxu0 0.0
      %1725 = vmatpush1.msra.mxu0 0.0
      %1726 = vmatprep.subr.mxu0 0.0
      %1727 = vmatpush1.msra.mxu0 0.0
      %1728 = vmatprep.subr.mxu0 0.0
      %1729 = vmatpush1.msra.mxu0 0.0
      %1730 = vmatprep.subr.mxu0 0.0
      %1731 = vmatpush1.msra.mxu0 0.0
      %1732 = vmatprep.subr.mxu0 0.0
      %1733 = vmatpush1.msra.mxu0 0.0
      %1734 = vmatprep.subr.mxu0 0.0
      %1735 = vmatpush1.msra.mxu0 0.0
      %1736 = vmatprep.subr.mxu0 0.0
      %1737 = vmatpush1.msra.mxu0 0.0
      %1738 = vmatprep.subr.mxu0 0.0
      %1739 = vmatpush1.msra.mxu0 0.0
      %1740 = vmatprep.subr.mxu0 0.0
      %1741 = vmatpush1.msra.mxu0 0.0
      %1742 = vmatprep.subr.mxu0 0.0
      %1743 = vmatpush1.msra.mxu0 0.0
      %1744 = vmatprep.subr.mxu0 0.0
      %1745 = vmatpush1.msra.mxu0 0.0
      %1746 = vmatprep.subr.mxu0 0.0
      %1747 = vmatpush1.msra.mxu0 0.0
      %1748 = vmatprep.subr.mxu0 0.0
      %1749 = vmatpush1.msra.mxu0 0.0
      %1750 = vmatprep.subr.mxu0 0.0
      %1751 = vmatpush1.msra.mxu0 0.0
      %1752 = vmatprep.subr.mxu0 0.0
      %1753 = vmatpush1.msra.mxu0 0.0
      %1754 = vmatprep.subr.mxu0 0.0
      %1755 = vmatpush1.msra.mxu0 0.0
      %1756 = vmatprep.subr.mxu0 0.0
      %1757 = vmatpush1.msra.mxu0 0.0
      %1758 = vmatprep.subr.mxu0 0.0
      %1759 = vmatpush1.msra.mxu0 0.0
      %1760 = vmatprep.subr.mxu0 0.0
      %1761 = vmatpush1.msra.mxu0 0.0
      %1762 = vmatprep.subr.mxu0 0.0
      %1763 = vmatpush1.msra.mxu0 0.0
      %1764 = vmatprep.subr.mxu0 0.0
      %1765 = vmatpush1.msra.mxu0 0.0
      %1766 = vmatprep.subr.mxu0 0.0
      %1767 = vmatpush1.msra.mxu0 0.0
      %1768 = vmatprep.subr.mxu0 0.0
      %1769 = vmatpush1.msra.mxu0 0.0
      %1770 = vmatprep.subr.mxu0 0.0
      %1771 = vmatpush1.msra.mxu0 0.0
      %1772 = vmatprep.subr.mxu0 0.0
      %1773 = vmatpush1.msra.mxu0 0.0
      %1774 = vmatprep.subr.mxu0 0.0
      %1775 = vmatpush1.msra.mxu0 0.0
      %1776 = vmatprep.subr.mxu0 0.0
      %1777 = vmatpush1.msra.mxu0 0.0
      %1778 = vmatprep.subr.mxu0 0.0
      %1779 = vmatpush1.msra.mxu0 0.0
      %1780 = vmatprep.subr.mxu0 0.0
      %1781 = vmatpush1.msra.mxu0 0.0
      %1782 = vmatprep.subr.mxu0 0.0
      %1783 = vmatpush1.msra.mxu0 0.0
      %1784 = vmatprep.subr.mxu0 0.0
      %1785 = vmatpush1.msra.mxu0 0.0
      %1786 = vmatprep.mubr.f32.mxu0 0.0
      %1787 = vmatmul.mubr.f32.gmra.mrb[0].mxu0 %v1714
      %v1788 = vpop.f32.mrb[0].mxu0
      %v1789 = vadd.f32 0.0, %v1788
      %v1790 = vpop.f32.mrb[0].mxu0
      %v1791 = vadd.f32 0.0, %v1790
      %1792 = vdwg.mxu0
      %v1795 = vcombine.low %v1789, %v1791
      %v1797 = vadd.f32 %v1710, %v1795
      %1798 = vst [vmem:[#allocation2] sm:$0xff] %v1797
      %v1799 = vld [vmem:[#allocation2] sm:$0xff]
      %s1800 = scalar_lea.vmem %s2, 28
      %v1801 = vld [vmem:[%s1800] sm:$0xf]
      %v1803 = vsel %vm235, %v1801, 0
      %v1806 = vsel %vm239, %v1128, 0
      %v1809 = vsel %vm239, %v1129, 0
      %1811 = vmatprep.subr.mxu0 %v1809
      %1812 = vmatpush1.msra.mxu0 %v1806
      %1813 = vmatprep.subr.mxu0 0.0
      %1814 = vmatpush1.msra.mxu0 0.0
      %1815 = vmatprep.subr.mxu0 0.0
      %1816 = vmatpush1.msra.mxu0 0.0
      %1817 = vmatprep.subr.mxu0 0.0
      %1818 = vmatpush1.msra.mxu0 0.0
      %1819 = vmatprep.subr.mxu0 0.0
      %1820 = vmatpush1.msra.mxu0 0.0
      %1821 = vmatprep.subr.mxu0 0.0
      %1822 = vmatpush1.msra.mxu0 0.0
      %1823 = vmatprep.subr.mxu0 0.0
      %1824 = vmatpush1.msra.mxu0 0.0
      %1825 = vmatprep.subr.mxu0 0.0
      %1826 = vmatpush1.msra.mxu0 0.0
      %1827 = vmatprep.subr.mxu0 0.0
      %1828 = vmatpush1.msra.mxu0 0.0
      %1829 = vmatprep.subr.mxu0 0.0
      %1830 = vmatpush1.msra.mxu0 0.0
      %1831 = vmatprep.subr.mxu0 0.0
      %1832 = vmatpush1.msra.mxu0 0.0
      %1833 = vmatprep.subr.mxu0 0.0
      %1834 = vmatpush1.msra.mxu0 0.0
      %1835 = vmatprep.subr.mxu0 0.0
      %1836 = vmatpush1.msra.mxu0 0.0
      %1837 = vmatprep.subr.mxu0 0.0
      %1838 = vmatpush1.msra.mxu0 0.0
      %1839 = vmatprep.subr.mxu0 0.0
      %1840 = vmatpush1.msra.mxu0 0.0
      %1841 = vmatprep.subr.mxu0 0.0
      %1842 = vmatpush1.msra.mxu0 0.0
      %1843 = vmatprep.subr.mxu0 0.0
      %1844 = vmatpush1.msra.mxu0 0.0
      %1845 = vmatprep.subr.mxu0 0.0
      %1846 = vmatpush1.msra.mxu0 0.0
      %1847 = vmatprep.subr.mxu0 0.0
      %1848 = vmatpush1.msra.mxu0 0.0
      %1849 = vmatprep.subr.mxu0 0.0
      %1850 = vmatpush1.msra.mxu0 0.0
      %1851 = vmatprep.subr.mxu0 0.0
      %1852 = vmatpush1.msra.mxu0 0.0
      %1853 = vmatprep.subr.mxu0 0.0
      %1854 = vmatpush1.msra.mxu0 0.0
      %1855 = vmatprep.subr.mxu0 0.0
      %1856 = vmatpush1.msra.mxu0 0.0
      %1857 = vmatprep.subr.mxu0 0.0
      %1858 = vmatpush1.msra.mxu0 0.0
      %1859 = vmatprep.subr.mxu0 0.0
      %1860 = vmatpush1.msra.mxu0 0.0
      %1861 = vmatprep.subr.mxu0 0.0
      %1862 = vmatpush1.msra.mxu0 0.0
      %1863 = vmatprep.subr.mxu0 0.0
      %1864 = vmatpush1.msra.mxu0 0.0
      %1865 = vmatprep.subr.mxu0 0.0
      %1866 = vmatpush1.msra.mxu0 0.0
      %1867 = vmatprep.subr.mxu0 0.0
      %1868 = vmatpush1.msra.mxu0 0.0
      %1869 = vmatprep.subr.mxu0 0.0
      %1870 = vmatpush1.msra.mxu0 0.0
      %1871 = vmatprep.subr.mxu0 0.0
      %1872 = vmatpush1.msra.mxu0 0.0
      %1873 = vmatprep.subr.mxu0 0.0
      %1874 = vmatpush1.msra.mxu0 0.0
      %1875 = vmatprep.mubr.f32.mxu0 0.0
      %1876 = vmatmul.mubr.f32.gmra.mrb[0].mxu0 %v1803
      %v1877 = vpop.f32.mrb[0].mxu0
      %v1878 = vadd.f32 0.0, %v1877
      %v1879 = vpop.f32.mrb[0].mxu0
      %v1880 = vadd.f32 0.0, %v1879
      %1881 = vdwg.mxu0
      %v1884 = vcombine.low %v1878, %v1880
      %v1886 = vadd.f32 %v1799, %v1884
      %1887 = vst [vmem:[#allocation2] sm:$0xff] %v1886
      %v1888 = vld [vmem:[#allocation2] sm:$0xff]
      %s1889 = scalar_lea.vmem %s2, 32
      %v1890 = vld [vmem:[%s1889] sm:$0xf]
      %v1892 = vsel %vm235, %v1890, 0
      %v1895 = vsel %vm239, %v1708, 0
      %v1898 = vsel %vm239, %v1709, 0
      %1900 = vmatprep.subr.mxu0 %v1898
      %1901 = vmatpush1.msra.mxu0 %v1895
      %1902 = vmatprep.subr.mxu0 0.0
      %1903 = vmatpush1.msra.mxu0 0.0
      %1904 = vmatprep.subr.mxu0 0.0
      %1905 = vmatpush1.msra.mxu0 0.0
      %1906 = vmatprep.subr.mxu0 0.0
      %1907 = vmatpush1.msra.mxu0 0.0
      %1908 = vmatprep.subr.mxu0 0.0
      %1909 = vmatpush1.msra.mxu0 0.0
      %1910 = vmatprep.subr.mxu0 0.0
      %1911 = vmatpush1.msra.mxu0 0.0
      %1912 = vmatprep.subr.mxu0 0.0
      %1913 = vmatpush1.msra.mxu0 0.0
      %1914 = vmatprep.subr.mxu0 0.0
      %1915 = vmatpush1.msra.mxu0 0.0
      %1916 = vmatprep.subr.mxu0 0.0
      %1917 = vmatpush1.msra.mxu0 0.0
      %1918 = vmatprep.subr.mxu0 0.0
      %1919 = vmatpush1.msra.mxu0 0.0
      %1920 = vmatprep.subr.mxu0 0.0
      %1921 = vmatpush1.msra.mxu0 0.0
      %1922 = vmatprep.subr.mxu0 0.0
      %1923 = vmatpush1.msra.mxu0 0.0
      %1924 = vmatprep.subr.mxu0 0.0
      %1925 = vmatpush1.msra.mxu0 0.0
      %1926 = vmatprep.subr.mxu0 0.0
      %1927 = vmatpush1.msra.mxu0 0.0
      %1928 = vmatprep.subr.mxu0 0.0
      %1929 = vmatpush1.msra.mxu0 0.0
      %1930 = vmatprep.subr.mxu0 0.0
      %1931 = vmatpush1.msra.mxu0 0.0
      %1932 = vmatprep.subr.mxu0 0.0
      %1933 = vmatpush1.msra.mxu0 0.0
      %1934 = vmatprep.subr.mxu0 0.0
      %1935 = vmatpush1.msra.mxu0 0.0
      %1936 = vmatprep.subr.mxu0 0.0
      %1937 = vmatpush1.msra.mxu0 0.0
      %1938 = vmatprep.subr.mxu0 0.0
      %1939 = vmatpush1.msra.mxu0 0.0
      %1940 = vmatprep.subr.mxu0 0.0
      %1941 = vmatpush1.msra.mxu0 0.0
      %1942 = vmatprep.subr.mxu0 0.0
      %1943 = vmatpush1.msra.mxu0 0.0
      %1944 = vmatprep.subr.mxu0 0.0
      %1945 = vmatpush1.msra.mxu0 0.0
      %1946 = vmatprep.subr.mxu0 0.0
      %1947 = vmatpush1.msra.mxu0 0.0
      %1948 = vmatprep.subr.mxu0 0.0
      %1949 = vmatpush1.msra.mxu0 0.0
      %1950 = vmatprep.subr.mxu0 0.0
      %1951 = vmatpush1.msra.mxu0 0.0
      %1952 = vmatprep.subr.mxu0 0.0
      %1953 = vmatpush1.msra.mxu0 0.0
      %1954 = vmatprep.subr.mxu0 0.0
      %1955 = vmatpush1.msra.mxu0 0.0
      %1956 = vmatprep.subr.mxu0 0.0
      %1957 = vmatpush1.msra.mxu0 0.0
      %1958 = vmatprep.subr.mxu0 0.0
      %1959 = vmatpush1.msra.mxu0 0.0
      %1960 = vmatprep.subr.mxu0 0.0
      %1961 = vmatpush1.msra.mxu0 0.0
      %1962 = vmatprep.subr.mxu0 0.0
      %1963 = vmatpush1.msra.mxu0 0.0
      %1964 = vmatprep.mubr.f32.mxu0 0.0
      %1965 = vmatmul.mubr.f32.gmra.mrb[0].mxu0 %v1892
      %v1966 = vpop.f32.mrb[0].mxu0
      %v1967 = vadd.f32 0.0, %v1966
      %v1968 = vpop.f32.mrb[0].mxu0
      %v1969 = vadd.f32 0.0, %v1968
      %1970 = vdwg.mxu0
      %v1973 = vcombine.low %v1967, %v1969
      %v1975 = vadd.f32 %v1888, %v1973
      %1976 = vst [vmem:[#allocation2] sm:$0xff] %v1975
      %v1977 = vld [vmem:[#allocation2] sm:$0xff]
      %v1979 = vcombine.high %v1977, %v1977
      %v1981 = vsel %vm239, %v1977, 0.0
      %v1982 = vsel %vm239, %v1979, 0.0
      %v1983 = vadd.f32 %v1981, %v1982
      %1984 = vadd.xlane.f32.xlu0 %v1983
      %v1985 = vpop.xlane.xlu0 %1984
      %v1986 = vmul.f32 %v1985, 0.00390625
      %v1987 = vmul.f32 %v1977, %v1977
      %v1989 = vcombine.high %v1987, %v1987
      %v1991 = vsel %vm239, %v1987, 0.0
      %v1992 = vsel %vm239, %v1989, 0.0
      %v1993 = vadd.f32 %v1991, %v1992
      %1994 = vadd.xlane.f32.xlu0 %v1993
      %v1995 = vpop.xlane.xlu0 %1994
      %v1996 = vmul.f32 %v1995, 0.00390625
      %v1997 = vmul.f32 %v1986, %v1986
      %v1998 = vsub.f32 %v1996, %v1997
      %v1999 = vmax.f32 %v1998, 0.0
      %v2002 = vunpack.c.l.s4 839922192
      %v2003 = vunpack.c.0.s8 %v2002
      %v2004 = vlaneseq
      %v2005 = vshrl.u32 %v2004, 7
      %v2006 = vsub.s32 %v2003, %v2005
      %v2007 = vrot.slane %v1986, %v2006
      %v2009 = vsub.f32 %v1977, %v2007
      %v2010 = vadd.f32 %v1999, 1e-05
      %v2011 = vrsqrt.pop %v2010
      %v2014 = vunpack.c.l.s4 839922192
      %v2015 = vunpack.c.0.s8 %v2014
      %v2016 = vlaneseq
      %v2017 = vshrl.u32 %v2016, 7
      %v2018 = vsub.s32 %v2015, %v2017
      %v2019 = vrot.slane %v2011, %v2018
      %v2021 = vmul.f32 %v2009, %v2019
      %v2022 = vld [vmem:[%s165] sm:$0xff]
      %v2023 = vadd.f32 %v2022, %v2021
      %2024 = vst [vmem:[%s170] sm:$0xff] %v2023
      %p2025 = scmp.lt.s32.totalorder %s14, 1
      %s2026 = scalar_select %p2025, %s14, 1
      %s2027 = smul.addr %s2026, 2
      %s2028 = smul.addr %s2027, 4
      %s2029 = scalar_lea.vmem %s3, %s2028
      // Predicated region
      $region33: #{resnet_block_forward.1} parent=31 // pred_check
        %p2030 = pneg %p100
      $region34: #{resnet_block_forward.1} parent=31 // pred_check_branch
        %2032 = sbr.rel (%p2030) target = $region36
      $region35: #{resnet_block_forward.1} parent=31 // pred_region
        _
      $region36: #{resnet_block_forward.1} parent=31 // pred_fallthru
        _
    $region32: #{resnet_block_forward.1} parent=5 // pred_fallthru
      _
    %p2033 = scmp.le.s32.totalorder 2, %s9
    // Predicated region
    $region37: #{resnet_block_forward.1} parent=5 // pred_check
      %p2034 = pneg %p2033
    $region38: #{resnet_block_forward.1} parent=5 // pred_check_branch
      %2036 = sbr.rel (%p2034) target = $region40
    $region39: #{resnet_block_forward.1} parent=5 // pred_region
      %s2037 = ssub.s32 %s9, 2
      // Predicated region
      $region41: #{resnet_block_forward.1} parent=39 // pred_check
        %p2038 = pneg %p106
      $region42: #{resnet_block_forward.1} parent=39 // pred_check_branch
        %2040 = sbr.rel (%p2038) target = $region44
      $region43: #{resnet_block_forward.1} parent=39 // pred_region
        %p2041 = scmp.lt.s32.totalorder %s15, 1
        %s2042 = scalar_select %p2041, %s15, 1
        %s2043 = smul.addr %s2042, 2
        %s2044 = smul.addr %s2043, 4
        %s2045 = scalar_lea.vmem %s3, %s2044
      $region44: #{resnet_block_forward.1} parent=39 // pred_fallthru
        _
    $region40: #{resnet_block_forward.1} parent=5 // pred_fallthru
      _
  $region6: #{resnet_block_forward.1} parent=0 // loop_footer
    %s13 = sadd.s32 1, %s9
  $region7: #{resnet_block_forward.1} parent=0 // loop_footer_branch
    %8 = sbr.rel target = $region3
  $region8: #{resnet_block_forward.1} parent=0 // loop_exit
    _

</llo_original>
